<compile_context>
chip_gen: v6e
topology: v6e:2x2x1
jax: 0.10.0
libtpu: 0.0.40
codegen_flags: <defaults>
</compile_context>

<pallas_src>
import jax
import jax.numpy as jnp
from jax.experimental import pallas as pl
from jax.experimental.pallas import tpu as pltpu

EPS = 1e-5            # nn.LayerNorm default eps
N_TORSION = 7
OUT_PACK = 128        # lane-dense packed output width (group[0:6], alpha[6:20])
VMEM_LIMIT = 64 * 1024 * 1024

# row indices inside the coalesced c_s-width vector table
_LN_S_G, _LN_S_B = 0, 1
_LN_IPA_G, _LN_IPA_B = 2, 3
_TR_LN_G, _TR_LN_B = 4, 5
_LIN_IN_B = 6
_TR_B1, _TR_B2, _TR_B3 = 7, 8, 9
# row indices inside the coalesced c-width vector table
_A_B, _L1_B1, _L1_B2, _L2_B1, _L2_B2 = 0, 1, 2, 3, 4
# slab indices inside the stacked weight cubes
_W_LIN_IN, _W_TR1, _W_TR2, _W_TR3 = 0, 1, 2, 3
_W_A_IN, _W_A_INIT = 0, 1
_W_L1A, _W_L1B, _W_L2A, _W_L2B = 0, 1, 2, 3

_HAS_BUFFERED = hasattr(pl, "Buffered")


# ----------------------------------------------------------------------------
# spec / tiling helpers
# ----------------------------------------------------------------------------
def _resident_spec(shape, index_map):
    """Constant-index weight input: fetched once, never re-fetched -> request
    single buffering (saves the redundant second VMEM buffer) when supported."""
    if _HAS_BUFFERED:
        try:
            return pl.BlockSpec(shape, index_map, pipeline_mode=pl.Buffered(1))
        except TypeError:            # older BlockSpec without pipeline_mode
            pass
    return pl.BlockSpec(shape, index_map)


def _round_up8(x):
    return ((x + 7) // 8) * 8


def _pick_row_tile(n, cap):
    """Row tile: multiple of 8 (or == n), capped, preferring >= 2 tiles so the
    'parallel' row axis shards across both v7x TensorCores."""
    if n <= 8:
        return n
    half = _round_up8((n + 1) // 2)
    return min(half, cap)


# ----------------------------------------------------------------------------
# in-kernel helpers
# ----------------------------------------------------------------------------
def _ln(x, g, b):
    # Independent E[x], E[x^2] reductions (fused single pass over x); the two
    # cross-lane reductions have no serial dependency.
    m = jnp.mean(x, axis=-1, keepdims=True)
    v = jnp.maximum(jnp.mean(x * x, axis=-1, keepdims=True) - m * m, 0.0)
    return (x - m) * jax.lax.rsqrt(v + EPS) * g + b


def _mxu(x, w):
    # bf16 operands at the MXU boundary, f32 accumulation.
    return jnp.dot(x.astype(jnp.bfloat16), w.astype(jnp.bfloat16),
                   preferred_element_type=jnp.float32)


def _row(ref, i):
    # (1, C) static-slice view -> load; broadcasts over (TM, C).
    return ref[i:i + 1, :]


# ----------------------------------------------------------------------------
# kernels
# ----------------------------------------------------------------------------
def _fused_structure_kernel(
    s_ref,            # (TM, c_s)   raw single representation rows
    vec_cs_ref,       # (10, c_s)   coalesced LN gains/biases + c_s-width biases
    w_cs_ref,         # (4, c_s, c_s) bf16: lin_in, transition 1/2/3
    w_a_ref,          # (2, c_s, c) bf16: [linear_in ; linear_initial]
    vec_c_ref,        # (5, c)      coalesced angle-resnet biases
    w_c_ref,          # (4, c, c)   bf16: resnet layer weights
    w_out_cs_ref,     # (c_s, 128)  bf16: backbone-update weight, lane-padded
    w_out_c_ref,      # (c, 128)    bf16: angle linear_out weight, lane-padded
    out_b_ref,        # (1, 128)    f32 : packed output bias
    packed_ref,       # (TM, 128)   output slab for this (layer, row-tile)
    s_state,          # VMEM (TM, c_s) f32: recurrent s, carried across layers
    init_proj,        # VMEM (TM, c)  f32: hoisted linear_initial(relu(s_init))
):
    layer = pl.program_id(1)

    # Prologue, folded into layer 0:
    #   s_initial = LN_s(s); s = linear_in(s_initial)
    #   init_proj = linear_initial(relu(s_initial)) + (b_in + b_initial)
    @pl.when(layer == 0)
    def _():
        si = _ln(s_ref[...], _row(vec_cs_ref, _LN_S_G), _row(vec_cs_ref, _LN_S_B))
        s_state[...] = _mxu(si, w_cs_ref[_W_LIN_IN]) + _row(vec_cs_ref, _LIN_IN_B)
        init_proj[...] = (_mxu(jnp.maximum(si, 0.0), w_a_ref[_W_A_INIT])
                          + _row(vec_c_ref, _A_B))

    # TODO(synk): InvariantPointAttention (s += ipa(s, z, T)) is not defined in
    # the reference source and is omitted here.
    # s = layer_norm_ipa(dropout_s(s))   (dropout = identity, eval mode)
    s = _ln(s_state[...], _row(vec_cs_ref, _LN_IPA_G), _row(vec_cs_ref, _LN_IPA_B))

    # StructureModuleTransition: s += lin3(relu(lin2(relu(lin1(s))))); s = LN(s)
    t = jnp.maximum(_mxu(s, w_cs_ref[_W_TR1]) + _row(vec_cs_ref, _TR_B1), 0.0)
    t = jnp.maximum(_mxu(t, w_cs_ref[_W_TR2]) + _row(vec_cs_ref, _TR_B2), 0.0)
    s = s + _mxu(t, w_cs_ref[_W_TR3]) + _row(vec_cs_ref, _TR_B3)
    s = _ln(s, _row(vec_cs_ref, _TR_LN_G), _row(vec_cs_ref, _TR_LN_B))
    s_state[...] = s                      # carry to next layer

    # AngleResNet, concat-free: per-layer half + hoisted initial half.
    a = _mxu(jnp.maximum(s, 0.0), w_a_ref[_W_A_IN]) + init_proj[...]
    # resnet layer 1: a += lin2(relu(lin1(relu(a))))
    h = jnp.maximum(_mxu(jnp.maximum(a, 0.0), w_c_ref[_W_L1A]) + _row(vec_c_ref, _L1_B1), 0.0)
    a = a + _mxu(h, w_c_ref[_W_L1B]) + _row(vec_c_ref, _L1_B2)
    # resnet layer 2
    h = jnp.maximum(_mxu(jnp.maximum(a, 0.0), w_c_ref[_W_L2A]) + _row(vec_c_ref, _L2_B1), 0.0)
    a = a + _mxu(h, w_c_ref[_W_L2B]) + _row(vec_c_ref, _L2_B2)

    # Lane-dense packed output: cols 0:6 = BackboneUpdate group, 6:20 = angle
    # logits (weights pre-padded to 128 output lanes -> unmasked stores).
    # Kept f32: only 20/128 lanes carry data (documented writeback padding),
    # but the group feeds quaternion math so we keep full precision.
    packed_ref[...] = (_mxu(s, w_out_cs_ref[...]) +
                       _mxu(jnp.maximum(a, 0.0), w_out_c_ref[...]) +
                       out_b_ref[...])


def _ln_rows_kernel(x_ref, g_ref, b_ref, o_ref):
    o_ref[...] = _ln(x_ref[...], g_ref[...], b_ref[...])


def _ln_packed_kernel(x_ref, g_ref, b_ref, seg_ref, o_ref):
    # x is (tr, P) with P = k*c_z = 128: k original rows packed per lane row.
    # seg is a (P, P) block-diagonal averaging matrix (1/c_z within a segment),
    # so x @ seg gives each segment's mean broadcast back to its own lanes —
    # fully lane-dense, no reshapes, no masked stores.
    x = x_ref[...]
    seg = seg_ref[...]
    m = jnp.dot(x, seg, preferred_element_type=jnp.float32)
    ex2 = jnp.dot(x * x, seg, preferred_element_type=jnp.float32)
    v = jnp.maximum(ex2 - m * m, 0.0)
    o_ref[...] = (x - m) * jax.lax.rsqrt(v + EPS) * g_ref[...] + b_ref[...]


# ----------------------------------------------------------------------------
# pallas_call wrappers
# ----------------------------------------------------------------------------
def fused_structure(s_raw, pk, n_layer):
    n, c_s = s_raw.shape
    c = pk["w_c"].shape[-1]
    p_out = pk["out_b"].shape[-1]
    tm = _pick_row_tile(n, 512)
    grid_rows = pl.cdiv(n, tm)
    # Note: if tm does not divide n, the padded rows of the last tile run LN on
    # undefined VMEM; rows are independent and the writeback is clipped to the
    # array bounds, so valid rows are unaffected.

    def rows_map(i, l):
        return (i, 0)

    weight_arrays = [pk["vec_cs"], pk["w_cs"], pk["w_a"], pk["vec_c"],
                     pk["w_c"], pk["w_out_cs"], pk["w_out_c"], pk["out_b"]]
    const2 = lambda i, l: (0, 0)
    const3 = lambda i, l: (0, 0, 0)
    in_specs = [pl.BlockSpec((tm, c_s), rows_map)]
    for arr in weight_arrays:
        imap = const3 if arr.ndim == 3 else const2
        in_specs.append(_resident_spec(arr.shape, imap))   # weights resident

    packed = pl.pallas_call(
        _fused_structure_kernel,
        out_shape=jax.ShapeDtypeStruct((n_layer, n, p_out), jnp.float32),
        grid=(grid_rows, n_layer),
        in_specs=in_specs,
        out_specs=pl.BlockSpec((None, tm, p_out), lambda i, l: (l, i, 0)),
        scratch_shapes=[pltpu.VMEM((tm, c_s), jnp.float32),   # recurrent s
                        pltpu.VMEM((tm, c), jnp.float32)],    # hoisted init proj
        compiler_params=pltpu.CompilerParams(
            dimension_semantics=("parallel", "arbitrary"),
            vmem_limit_bytes=VMEM_LIMIT),
    )(s_raw, *weight_arrays)
    return packed


def layer_norm_z(z, g, b):
    zshape = z.shape
    cz = zshape[-1]
    x = z.reshape(-1, cz)
    rows = x.shape[0]

    if cz < 128 and 128 % cz == 0 and rows % (128 // cz) == 0:
        # Lane-dense repack: k consecutive rows share one 128-wide lane row.
        k = 128 // cz
        pwidth = 128
        rows_p = rows // k
        xp = x.reshape(rows_p, pwidth)                   # contiguous, free in XLA
        gp = jnp.tile(g.reshape(1, cz), (1, k))
        bp = jnp.tile(b.reshape(1, cz), (1, k))
        seg = jnp.kron(jnp.eye(k, dtype=jnp.float32),
                       jnp.full((cz, cz), 1.0 / cz, dtype=jnp.float32))
        tr = _pick_row_tile(rows_p, 4096)
        out = pl.pallas_call(
            _ln_packed_kernel,
            out_shape=jax.ShapeDtypeStruct((rows_p, pwidth), jnp.float32),
            grid=(pl.cdiv(rows_p, tr),),
            in_specs=[pl.BlockSpec((tr, pwidth), lambda i: (i, 0)),
                      _resident_spec((1, pwidth), lambda i: (0, 0)),
                      _resident_spec((1, pwidth), lambda i: (0, 0)),
                      _resident_spec((pwidth, pwidth), lambda i: (0, 0))],
            out_specs=pl.BlockSpec((tr, pwidth), lambda i: (i, 0)),
            compiler_params=pltpu.CompilerParams(
                dimension_semantics=("parallel",),
                vmem_limit_bytes=VMEM_LIMIT),
        )(xp, gp, bp, seg)
        return out.reshape(zshape)

    # Fallback: plain row-tiled LN (c_z >= 128 or awkward packing).
    tr = _pick_row_tile(rows, 4096)
    out = pl.pallas_call(
        _ln_rows_kernel,
        out_shape=jax.ShapeDtypeStruct((rows, cz), jnp.float32),
        grid=(pl.cdiv(rows, tr),),
        in_specs=[pl.BlockSpec((tr, cz), lambda i: (i, 0)),
                  _resident_spec((1, cz), lambda i: (0, 0)),
                  _resident_spec((1, cz), lambda i: (0, 0))],
        out_specs=pl.BlockSpec((tr, cz), lambda i: (i, 0)),
        compiler_params=pltpu.CompilerParams(
            dimension_semantics=("parallel",),
            vmem_limit_bytes=VMEM_LIMIT),
    )(x, g, b)
    return out.reshape(zshape)


# ----------------------------------------------------------------------------
# small-matrix glue (quaternion -> rotation, 4x4 frame algebra)
# ----------------------------------------------------------------------------
def quat_to_3x3_rotation(quat):
    w, x, y, z = (quat[..., 0], quat[..., 1], quat[..., 2], quat[..., 3])
    r0 = jnp.stack([1 - 2 * (y * y + z * z), 2 * (x * y - w * z), 2 * (x * z + w * y)], -1)
    r1 = jnp.stack([2 * (x * y + w * z), 1 - 2 * (x * x + z * z), 2 * (y * z - w * x)], -1)
    r2 = jnp.stack([2 * (x * z - w * y), 2 * (y * z + w * x), 1 - 2 * (x * x + y * y)], -1)
    return jnp.stack([r0, r1, r2], axis=-2)


def assemble_4x4_transform(R, t):
    top = jnp.concatenate([R, t[..., :, None]], axis=-1)            # [..., 3, 4]
    bottom = jnp.broadcast_to(jnp.array([0.0, 0.0, 0.0, 1.0], R.dtype),
                              top.shape[:-2] + (1, 4))
    return jnp.concatenate([top, bottom], axis=-2)                  # [..., 4, 4]


def backbone_update_from_group(group):
    ones = jnp.ones(group.shape[:-1] + (1,), group.dtype)
    quat = jnp.concatenate([ones, group[..., :3]], axis=-1)
    quat = quat / jnp.linalg.norm(quat, axis=-1, keepdims=True)
    t = group[..., 3:]
    return assemble_4x4_transform(quat_to_3x3_rotation(quat), t)


def compose_frames(groups):
    """T_l = T_{l-1} @ bb_update(group_l), tiny 4x4 algebra via lax.scan."""
    n_res = groups.shape[1]

    def step(T, group_l):
        T_new = jnp.einsum("nij,njk->nik", T, backbone_update_from_group(group_l))
        return T_new, T_new

    T0 = jnp.broadcast_to(jnp.eye(4, dtype=jnp.float32), (n_res, 4, 4))
    return jax.lax.scan(step, T0, groups)


# ----------------------------------------------------------------------------
# StructureModule forward
# ----------------------------------------------------------------------------
def structure_module_forward(params, packed_params, s, z, F, n_layer=2):
    n_res = s.shape[0]

    # one fused kernel: all layers, lane-dense packed (group | alpha) outputs
    packed = fused_structure(s, packed_params, n_layer)
    groups = packed[:, :, 0:6]                                   # [L, N, 6]
    alpha = packed[:, :, 6:6 + 2 * N_TORSION].reshape(n_layer, n_res, N_TORSION, 2)

    # z = LN_z(z) — lane-dense, row-tiled bandwidth-bound kernel
    z_norm = layer_norm_z(z, params["ln_z_g"], params["ln_z_b"])

    T_final, frames = compose_frames(groups)
    scaled_T = T_final.at[..., :3, 3].multiply(10.0)

    # TODO(synk): compute_all_atom_coordinates / residue_constants are not
    # provided in the reference source, so final_positions / position_mask /
    # pseudo_beta_positions are omitted.
    return {
        "angles": alpha,           # [n_layer, N_res, 7, 2]
        "frames": frames,          # [n_layer, N_res, 4, 4]
        "scaled_frames": scaled_T, # [N_res, 4, 4]
        "normed_z": z_norm,        # [N_res, N_res, c_z]
        "F": F,
    }


# ----------------------------------------------------------------------------
# deterministic synthetic parameters + packing for the fused kernel
# ----------------------------------------------------------------------------
def init_params(key, c_s, c_z, c):
    keys = iter(jax.random.split(key, 64))

    def w(shape, scale=0.1):
        return scale * jax.random.normal(next(keys), shape, dtype=jnp.float32)

    def b(n):
        return 0.01 * jax.random.normal(next(keys), (1, n), dtype=jnp.float32)

    def ln(n):
        g = 1.0 + 0.05 * jax.random.normal(next(keys), (1, n), dtype=jnp.float32)
        return g, b(n)

    p = {}
    p["ln_s_g"], p["ln_s_b"] = ln(c_s)
    p["ln_z_g"], p["ln_z_b"] = ln(c_z)
    p["lin_in_w"], p["lin_in_b"] = w((c_s, c_s)), b(c_s)
    p["ln_ipa_g"], p["ln_ipa_b"] = ln(c_s)
    p["tr_w1"], p["tr_b1"] = w((c_s, c_s)), b(c_s)
    p["tr_w2"], p["tr_b2"] = w((c_s, c_s)), b(c_s)
    p["tr_w3"], p["tr_b3"] = w((c_s, c_s)), b(c_s)
    p["tr_ln_g"], p["tr_ln_b"] = ln(c_s)
    p["bb_w"], p["bb_b"] = w((c_s, 6)), b(6)
    p["a_in_w"], p["a_in_b"] = w((c_s, c)), b(c)
    p["a_init_w"], p["a_init_b"] = w((c_s, c)), b(c)
    p["a_l1_w1"], p["a_l1_b1"] = w((c, c)), b(c)
    p["a_l1_w2"], p["a_l1_b2"] = w((c, c)), b(c)
    p["a_l2_w1"], p["a_l2_b1"] = w((c, c)), b(c)
    p["a_l2_w2"], p["a_l2_b2"] = w((c, c)), b(c)
    p["a_out_w"], p["a_out_b"] = w((c, 2 * N_TORSION)), b(2 * N_TORSION)
    return p


def pack_params(p, c_s, c):
    """Coalesce small params into a few stacked arrays; bf16-cast MXU weights;
    pad the narrow output weights into one lane-dense 128-wide slab."""
    vec_cs = jnp.concatenate(
        [p["ln_s_g"], p["ln_s_b"], p["ln_ipa_g"], p["ln_ipa_b"],
         p["tr_ln_g"], p["tr_ln_b"], p["lin_in_b"],
         p["tr_b1"], p["tr_b2"], p["tr_b3"]], axis=0)                    # [10, c_s]
    w_cs = jnp.stack([p["lin_in_w"], p["tr_w1"], p["tr_w2"], p["tr_w3"]],
                     axis=0).astype(jnp.bfloat16)                        # [4, c_s, c_s]
    w_a = jnp.stack([p["a_in_w"], p["a_init_w"]],
                    axis=0).astype(jnp.bfloat16)                         # [2, c_s, c]
    vec_c = jnp.concatenate(
        [p["a_in_b"] + p["a_init_b"],                                    # combined, added once
         p["a_l1_b1"], p["a_l1_b2"], p["a_l2_b1"], p["a_l2_b2"]], axis=0)  # [5, c]
    w_c = jnp.stack([p["a_l1_w1"], p["a_l1_w2"], p["a_l2_w1"], p["a_l2_w2"]],
                    axis=0).astype(jnp.bfloat16)                         # [4, c, c]

    w_out_cs = jnp.zeros((c_s, OUT_PACK), jnp.float32)
    w_out_cs = w_out_cs.at[:, 0:6].set(p["bb_w"]).astype(jnp.bfloat16)
    w_out_c = jnp.zeros((c, OUT_PACK), jnp.float32)
    w_out_c = w_out_c.at[:, 6:6 + 2 * N_TORSION].set(p["a_out_w"]).astype(jnp.bfloat16)
    out_b = jnp.zeros((1, OUT_PACK), jnp.float32)
    out_b = out_b.at[:, 0:6].set(p["bb_b"]).at[:, 6:6 + 2 * N_TORSION].set(p["a_out_b"])

    return dict(vec_cs=vec_cs, w_cs=w_cs, w_a=w_a, vec_c=vec_c,
                w_c=w_c, w_out_cs=w_out_cs, w_out_c=w_out_c, out_b=out_b)


# ----------------------------------------------------------------------------
# plain-JAX f32 reference of the same stack (IPA omitted, like the kernel)
# ----------------------------------------------------------------------------
def reference_stack(p, s, z, n_layer):
    relu = jax.nn.relu

    def ln(x, g, b):
        m = x.mean(-1, keepdims=True)
        v = ((x - m) ** 2).mean(-1, keepdims=True)
        return (x - m) / jnp.sqrt(v + EPS) * g + b

    s_init = ln(s, p["ln_s_g"], p["ln_s_b"])
    z_n = ln(z, p["ln_z_g"], p["ln_z_b"])
    sc = s_init @ p["lin_in_w"] + p["lin_in_b"]
    groups, alphas = [], []
    for _ in range(n_layer):
        sc = ln(sc, p["ln_ipa_g"], p["ln_ipa_b"])
        t = relu(sc @ p["tr_w1"] + p["tr_b1"])
        t = relu(t @ p["tr_w2"] + p["tr_b2"])
        sc = ln(sc + t @ p["tr_w3"] + p["tr_b3"], p["tr_ln_g"], p["tr_ln_b"])
        groups.append(sc @ p["bb_w"] + p["bb_b"])
        a = (relu(sc) @ p["a_in_w"] + p["a_in_b"]
             + relu(s_init) @ p["a_init_w"] + p["a_init_b"])
        a = a + relu(relu(a) @ p["a_l1_w1"] + p["a_l1_b1"]) @ p["a_l1_w2"] + p["a_l1_b2"]
        a = a + relu(relu(a) @ p["a_l2_w1"] + p["a_l2_b1"]) @ p["a_l2_w2"] + p["a_l2_b2"]
        alphas.append(relu(a) @ p["a_out_w"] + p["a_out_b"])
    return jnp.stack(groups), jnp.stack(alphas), z_n


if __name__ == "__main__":
    key = jax.random.PRNGKey(0)
    c_s, c_z, c, n_layer, N_res = 32, 16, 32, 2, 16   # small, module-consistent

    kp, ks, kz, kf = jax.random.split(key, 4)
    params = init_params(kp, c_s, c_z, c)
    packed_params = pack_params(params, c_s, c)
    s = jax.random.normal(ks, (N_res, c_s), dtype=jnp.float32)
    z = jax.random.normal(kz, (N_res, N_res, c_z), dtype=jnp.float32)
    F = jax.random.randint(kf, (N_res,), 0, 20)

    fwd = jax.jit(structure_module_forward, static_argnames=("n_layer",))
    outputs = jax.block_until_ready(fwd(params, packed_params, s, z, F, n_layer=n_layer))

    # shape + finiteness checks
    assert outputs["angles"].shape == (n_layer, N_res, N_TORSION, 2)
    assert outputs["frames"].shape == (n_layer, N_res, 4, 4)
    assert outputs["scaled_frames"].shape == (N_res, 4, 4)
    assert outputs["normed_z"].shape == (N_res, N_res, c_z)
    assert jnp.all(jnp.isfinite(outputs["angles"]))
    assert jnp.all(jnp.isfinite(outputs["frames"]))
    assert jnp.all(jnp.isfinite(outputs["normed_z"]))

    # numerical cross-check against a plain-JAX f32 reference (loose tolerance:
    # kernel matmul weights are bf16 at the MXU boundary by design)
    ref_groups, ref_alpha, ref_zn = reference_stack(params, s, z, n_layer)
    _, ref_frames = compose_frames(ref_groups)
    err_a = float(jnp.max(jnp.abs(
        outputs["angles"] - ref_alpha.reshape(n_layer, N_res, N_TORSION, 2))))
    err_f = float(jnp.max(jnp.abs(outputs["frames"] - ref_frames)))
    err_z = float(jnp.max(jnp.abs(outputs["normed_z"] - ref_zn)))
    assert err_a < 0.1 and err_f < 0.1 and err_z < 0.05, (err_a, err_f, err_z)

    print("KERNEL_OK")
</pallas_src>

<mosaic_0001>
module attributes {stable_mosaic.version = 11 : i64} {
  func.func @_fused_structure_kernel(%arg0: i32, %arg1: i32, %arg2: memref<8x32xf32, #tpu.memory_space<vmem>>, %arg3: memref<10x32xf32, #tpu.memory_space<vmem>>, %arg4: memref<4x32x32xbf16, #tpu.memory_space<vmem>>, %arg5: memref<2x32x32xbf16, #tpu.memory_space<vmem>>, %arg6: memref<5x32xf32, #tpu.memory_space<vmem>>, %arg7: memref<4x32x32xbf16, #tpu.memory_space<vmem>>, %arg8: memref<32x128xbf16, #tpu.memory_space<vmem>>, %arg9: memref<32x128xbf16, #tpu.memory_space<vmem>>, %arg10: memref<1x128xf32, #tpu.memory_space<vmem>>, %arg11: memref<1x8x128xf32, #tpu.memory_space<vmem>>, %arg12: memref<8x32xf32, #tpu.memory_space<vmem>>, %arg13: memref<8x32xf32, #tpu.memory_space<vmem>>) attributes {dimension_semantics = [#tpu.dimension_semantics<parallel>, #tpu.dimension_semantics<arbitrary>], iteration_bounds = array<i64: 2, 2>, scalar_prefetch = 0 : i64, scratch_operands = 2 : i64, tpu.core_type = #tpu.core_type<tc>, window_params = [{transform_indices = @transform_0, window_bounds = array<i64: 8, 32>}, {pipeline_mode = #tpu.pipeline_mode<synchronous>, transform_indices = @transform_1, window_bounds = array<i64: 10, 32>}, {pipeline_mode = #tpu.pipeline_mode<synchronous>, transform_indices = @transform_2, window_bounds = array<i64: 4, 32, 32>}, {pipeline_mode = #tpu.pipeline_mode<synchronous>, transform_indices = @transform_3, window_bounds = array<i64: 2, 32, 32>}, {pipeline_mode = #tpu.pipeline_mode<synchronous>, transform_indices = @transform_4, window_bounds = array<i64: 5, 32>}, {pipeline_mode = #tpu.pipeline_mode<synchronous>, transform_indices = @transform_5, window_bounds = array<i64: 4, 32, 32>}, {pipeline_mode = #tpu.pipeline_mode<synchronous>, transform_indices = @transform_6, window_bounds = array<i64: 32, 128>}, {pipeline_mode = #tpu.pipeline_mode<synchronous>, transform_indices = @transform_7, window_bounds = array<i64: 32, 128>}, {pipeline_mode = #tpu.pipeline_mode<synchronous>, transform_indices = @transform_8, window_bounds = array<i64: 1, 128>}, {transform_indices = @transform_9, window_bounds = array<i64: 1, 8, 128>}]} {
    %c0_i32 = arith.constant 0 : i32
    %0 = arith.cmpi eq, %arg1, %c0_i32 : i32
    %1 = arith.extui %0 : i1 to i32
    %c0_i32_0 = arith.constant 0 : i32
    %2 = arith.cmpi ne, %1, %c0_i32_0 : i32
    scf.if %2 {
      %c0_82 = arith.constant 0 : index
      %c0_83 = arith.constant 0 : index
      %144 = vector.load %arg2[%c0_82, %c0_83] : memref<8x32xf32, #tpu.memory_space<vmem>>, vector<8x32xf32>
      %c0_84 = arith.constant 0 : index
      %c0_85 = arith.constant 0 : index
      %145 = vector.load %arg3[%c0_84, %c0_85] : memref<10x32xf32, #tpu.memory_space<vmem>>, vector<1x32xf32>
      %c1_86 = arith.constant 1 : index
      %c0_87 = arith.constant 0 : index
      %146 = vector.load %arg3[%c1_86, %c0_87] : memref<10x32xf32, #tpu.memory_space<vmem>>, vector<1x32xf32>
      %cst_88 = arith.constant dense<0.000000e+00> : vector<8xf32>
      %147 = vector.multi_reduction <add>, %144, %cst_88 [1] : vector<8x32xf32> to vector<8xf32>
      %148 = vector.shape_cast %147 : vector<8xf32> to vector<8x1xf32>
      %cst_89 = arith.constant 3.200000e+01 : f32
      %149 = vector.broadcast %cst_89 : f32 to vector<8x1xf32>
      %150 = arith.divf %148, %149 : vector<8x1xf32>
      %151 = arith.mulf %144, %144 : vector<8x32xf32>
      %cst_90 = arith.constant dense<0.000000e+00> : vector<8xf32>
      %152 = vector.multi_reduction <add>, %151, %cst_90 [1] : vector<8x32xf32> to vector<8xf32>
      %153 = vector.shape_cast %152 : vector<8xf32> to vector<8x1xf32>
      %cst_91 = arith.constant 3.200000e+01 : f32
      %154 = vector.broadcast %cst_91 : f32 to vector<8x1xf32>
      %155 = arith.divf %153, %154 : vector<8x1xf32>
      %156 = arith.mulf %150, %150 : vector<8x1xf32>
      %157 = arith.subf %155, %156 : vector<8x1xf32>
      %cst_92 = arith.constant 0.000000e+00 : f32
      %158 = vector.broadcast %cst_92 : f32 to vector<8x1xf32>
      %159 = arith.maximumf %157, %158 : vector<8x1xf32>
      %160 = vector.broadcast %150 : vector<8x1xf32> to vector<8x32xf32>
      %161 = arith.subf %144, %160 : vector<8x32xf32>
      %cst_93 = arith.constant 9.99999974E-6 : f32
      %162 = vector.broadcast %cst_93 : f32 to vector<8x1xf32>
      %163 = arith.addf %159, %162 : vector<8x1xf32>
      %164 = math.rsqrt %163 : vector<8x1xf32>
      %165 = vector.broadcast %164 : vector<8x1xf32> to vector<8x32xf32>
      %166 = arith.mulf %161, %165 : vector<8x32xf32>
      %167 = vector.broadcast %145 : vector<1x32xf32> to vector<8x32xf32>
      %168 = arith.mulf %166, %167 : vector<8x32xf32>
      %169 = vector.broadcast %146 : vector<1x32xf32> to vector<8x32xf32>
      %170 = arith.addf %168, %169 : vector<8x32xf32>
      %c0_94 = arith.constant 0 : index
      %c0_95 = arith.constant 0 : index
      %c0_96 = arith.constant 0 : index
      %171 = vector.load %arg4[%c0_94, %c0_95, %c0_96] : memref<4x32x32xbf16, #tpu.memory_space<vmem>>, vector<1x32x32xbf16>
      %172 = vector.shape_cast %171 : vector<1x32x32xbf16> to vector<32x32xbf16>
      %173 = arith.truncf %170 : vector<8x32xf32> to vector<8x32xbf16>
      %cst_97 = arith.constant dense<0.000000e+00> : vector<8x32xf32>
      %174 = tpu.matmul %173, %172, %cst_97 {dimension_numbers = #tpu.dot_dimension_numbers<[1], [0], [0], [1], [0, 0, 1, 1], [], []>} : vector<8x32xbf16>, vector<32x32xbf16>, vector<8x32xf32> -> vector<8x32xf32>
      %c6 = arith.constant 6 : index
      %c0_98 = arith.constant 0 : index
      %175 = vector.load %arg3[%c6, %c0_98] : memref<10x32xf32, #tpu.memory_space<vmem>>, vector<1x32xf32>
      %176 = vector.broadcast %175 : vector<1x32xf32> to vector<8x32xf32>
      %177 = arith.addf %174, %176 : vector<8x32xf32>
      %c0_99 = arith.constant 0 : index
      %c0_100 = arith.constant 0 : index
      %178 = vector.load %arg12[%c0_99, %c0_100] : memref<8x32xf32, #tpu.memory_space<vmem>>, vector<8x32xf32>
      tpu.vector_store %arg12[%c0_99, %c0_100], %177 {strides = array<i32>} : memref<8x32xf32, #tpu.memory_space<vmem>>, vector<8x32xf32>,
      %cst_101 = arith.constant 0.000000e+00 : f32
      %179 = vector.broadcast %cst_101 : f32 to vector<8x32xf32>
      %180 = arith.maximumf %170, %179 : vector<8x32xf32>
      %c1_102 = arith.constant 1 : index
      %c0_103 = arith.constant 0 : index
      %c0_104 = arith.constant 0 : index
      %181 = vector.load %arg5[%c1_102, %c0_103, %c0_104] : memref<2x32x32xbf16, #tpu.memory_space<vmem>>, vector<1x32x32xbf16>
      %182 = vector.shape_cast %181 : vector<1x32x32xbf16> to vector<32x32xbf16>
      %183 = arith.truncf %180 : vector<8x32xf32> to vector<8x32xbf16>
      %cst_105 = arith.constant dense<0.000000e+00> : vector<8x32xf32>
      %184 = tpu.matmul %183, %182, %cst_105 {dimension_numbers = #tpu.dot_dimension_numbers<[1], [0], [0], [1], [0, 0, 1, 1], [], []>} : vector<8x32xbf16>, vector<32x32xbf16>, vector<8x32xf32> -> vector<8x32xf32>
      %c0_106 = arith.constant 0 : index
      %c0_107 = arith.constant 0 : index
      %185 = vector.load %arg6[%c0_106, %c0_107] : memref<5x32xf32, #tpu.memory_space<vmem>>, vector<1x32xf32>
      %186 = vector.broadcast %185 : vector<1x32xf32> to vector<8x32xf32>
      %187 = arith.addf %184, %186 : vector<8x32xf32>
      %c0_108 = arith.constant 0 : index
      %c0_109 = arith.constant 0 : index
      %188 = vector.load %arg13[%c0_108, %c0_109] : memref<8x32xf32, #tpu.memory_space<vmem>>, vector<8x32xf32>
      tpu.vector_store %arg13[%c0_108, %c0_109], %187 {strides = array<i32>} : memref<8x32xf32, #tpu.memory_space<vmem>>, vector<8x32xf32>,
    } else {
    }
    %c0 = arith.constant 0 : index
    %c0_1 = arith.constant 0 : index
    %3 = vector.load %arg12[%c0, %c0_1] : memref<8x32xf32, #tpu.memory_space<vmem>>, vector<8x32xf32>
    %c2 = arith.constant 2 : index
    %c0_2 = arith.constant 0 : index
    %4 = vector.load %arg3[%c2, %c0_2] : memref<10x32xf32, #tpu.memory_space<vmem>>, vector<1x32xf32>
    %c3 = arith.constant 3 : index
    %c0_3 = arith.constant 0 : index
    %5 = vector.load %arg3[%c3, %c0_3] : memref<10x32xf32, #tpu.memory_space<vmem>>, vector<1x32xf32>
    %cst = arith.constant dense<0.000000e+00> : vector<8xf32>
    %6 = vector.multi_reduction <add>, %3, %cst [1] : vector<8x32xf32> to vector<8xf32>
    %7 = vector.shape_cast %6 : vector<8xf32> to vector<8x1xf32>
    %cst_4 = arith.constant 3.200000e+01 : f32
    %8 = vector.broadcast %cst_4 : f32 to vector<8x1xf32>
    %9 = arith.divf %7, %8 : vector<8x1xf32>
    %10 = arith.mulf %3, %3 : vector<8x32xf32>
    %cst_5 = arith.constant dense<0.000000e+00> : vector<8xf32>
    %11 = vector.multi_reduction <add>, %10, %cst_5 [1] : vector<8x32xf32> to vector<8xf32>
    %12 = vector.shape_cast %11 : vector<8xf32> to vector<8x1xf32>
    %cst_6 = arith.constant 3.200000e+01 : f32
    %13 = vector.broadcast %cst_6 : f32 to vector<8x1xf32>
    %14 = arith.divf %12, %13 : vector<8x1xf32>
    %15 = arith.mulf %9, %9 : vector<8x1xf32>
    %16 = arith.subf %14, %15 : vector<8x1xf32>
    %cst_7 = arith.constant 0.000000e+00 : f32
    %17 = vector.broadcast %cst_7 : f32 to vector<8x1xf32>
    %18 = arith.maximumf %16, %17 : vector<8x1xf32>
    %19 = vector.broadcast %9 : vector<8x1xf32> to vector<8x32xf32>
    %20 = arith.subf %3, %19 : vector<8x32xf32>
    %cst_8 = arith.constant 9.99999974E-6 : f32
    %21 = vector.broadcast %cst_8 : f32 to vector<8x1xf32>
    %22 = arith.addf %18, %21 : vector<8x1xf32>
    %23 = math.rsqrt %22 : vector<8x1xf32>
    %24 = vector.broadcast %23 : vector<8x1xf32> to vector<8x32xf32>
    %25 = arith.mulf %20, %24 : vector<8x32xf32>
    %26 = vector.broadcast %4 : vector<1x32xf32> to vector<8x32xf32>
    %27 = arith.mulf %25, %26 : vector<8x32xf32>
    %28 = vector.broadcast %5 : vector<1x32xf32> to vector<8x32xf32>
    %29 = arith.addf %27, %28 : vector<8x32xf32>
    %c1 = arith.constant 1 : index
    %c0_9 = arith.constant 0 : index
    %c0_10 = arith.constant 0 : index
    %30 = vector.load %arg4[%c1, %c0_9, %c0_10] : memref<4x32x32xbf16, #tpu.memory_space<vmem>>, vector<1x32x32xbf16>
    %31 = vector.shape_cast %30 : vector<1x32x32xbf16> to vector<32x32xbf16>
    %32 = arith.truncf %29 : vector<8x32xf32> to vector<8x32xbf16>
    %cst_11 = arith.constant dense<0.000000e+00> : vector<8x32xf32>
    %33 = tpu.matmul %32, %31, %cst_11 {dimension_numbers = #tpu.dot_dimension_numbers<[1], [0], [0], [1], [0, 0, 1, 1], [], []>} : vector<8x32xbf16>, vector<32x32xbf16>, vector<8x32xf32> -> vector<8x32xf32>
    %c7 = arith.constant 7 : index
    %c0_12 = arith.constant 0 : index
    %34 = vector.load %arg3[%c7, %c0_12] : memref<10x32xf32, #tpu.memory_space<vmem>>, vector<1x32xf32>
    %35 = vector.broadcast %34 : vector<1x32xf32> to vector<8x32xf32>
    %36 = arith.addf %33, %35 : vector<8x32xf32>
    %cst_13 = arith.constant 0.000000e+00 : f32
    %37 = vector.broadcast %cst_13 : f32 to vector<8x32xf32>
    %38 = arith.maximumf %36, %37 : vector<8x32xf32>
    %c2_14 = arith.constant 2 : index
    %c0_15 = arith.constant 0 : index
    %c0_16 = arith.constant 0 : index
    %39 = vector.load %arg4[%c2_14, %c0_15, %c0_16] : memref<4x32x32xbf16, #tpu.memory_space<vmem>>, vector<1x32x32xbf16>
    %40 = vector.shape_cast %39 : vector<1x32x32xbf16> to vector<32x32xbf16>
    %41 = arith.truncf %38 : vector<8x32xf32> to vector<8x32xbf16>
    %cst_17 = arith.constant dense<0.000000e+00> : vector<8x32xf32>
    %42 = tpu.matmul %41, %40, %cst_17 {dimension_numbers = #tpu.dot_dimension_numbers<[1], [0], [0], [1], [0, 0, 1, 1], [], []>} : vector<8x32xbf16>, vector<32x32xbf16>, vector<8x32xf32> -> vector<8x32xf32>
    %c8 = arith.constant 8 : index
    %c0_18 = arith.constant 0 : index
    %43 = vector.load %arg3[%c8, %c0_18] : memref<10x32xf32, #tpu.memory_space<vmem>>, vector<1x32xf32>
    %44 = vector.broadcast %43 : vector<1x32xf32> to vector<8x32xf32>
    %45 = arith.addf %42, %44 : vector<8x32xf32>
    %cst_19 = arith.constant 0.000000e+00 : f32
    %46 = vector.broadcast %cst_19 : f32 to vector<8x32xf32>
    %47 = arith.maximumf %45, %46 : vector<8x32xf32>
    %c3_20 = arith.constant 3 : index
    %c0_21 = arith.constant 0 : index
    %c0_22 = arith.constant 0 : index
    %48 = vector.load %arg4[%c3_20, %c0_21, %c0_22] : memref<4x32x32xbf16, #tpu.memory_space<vmem>>, vector<1x32x32xbf16>
    %49 = vector.shape_cast %48 : vector<1x32x32xbf16> to vector<32x32xbf16>
    %50 = arith.truncf %47 : vector<8x32xf32> to vector<8x32xbf16>
    %cst_23 = arith.constant dense<0.000000e+00> : vector<8x32xf32>
    %51 = tpu.matmul %50, %49, %cst_23 {dimension_numbers = #tpu.dot_dimension_numbers<[1], [0], [0], [1], [0, 0, 1, 1], [], []>} : vector<8x32xbf16>, vector<32x32xbf16>, vector<8x32xf32> -> vector<8x32xf32>
    %52 = arith.addf %29, %51 : vector<8x32xf32>
    %c9 = arith.constant 9 : index
    %c0_24 = arith.constant 0 : index
    %53 = vector.load %arg3[%c9, %c0_24] : memref<10x32xf32, #tpu.memory_space<vmem>>, vector<1x32xf32>
    %54 = vector.broadcast %53 : vector<1x32xf32> to vector<8x32xf32>
    %55 = arith.addf %52, %54 : vector<8x32xf32>
    %c4 = arith.constant 4 : index
    %c0_25 = arith.constant 0 : index
    %56 = vector.load %arg3[%c4, %c0_25] : memref<10x32xf32, #tpu.memory_space<vmem>>, vector<1x32xf32>
    %c5 = arith.constant 5 : index
    %c0_26 = arith.constant 0 : index
    %57 = vector.load %arg3[%c5, %c0_26] : memref<10x32xf32, #tpu.memory_space<vmem>>, vector<1x32xf32>
    %cst_27 = arith.constant dense<0.000000e+00> : vector<8xf32>
    %58 = vector.multi_reduction <add>, %55, %cst_27 [1] : vector<8x32xf32> to vector<8xf32>
    %59 = vector.shape_cast %58 : vector<8xf32> to vector<8x1xf32>
    %cst_28 = arith.constant 3.200000e+01 : f32
    %60 = vector.broadcast %cst_28 : f32 to vector<8x1xf32>
    %61 = arith.divf %59, %60 : vector<8x1xf32>
    %62 = arith.mulf %55, %55 : vector<8x32xf32>
    %cst_29 = arith.constant dense<0.000000e+00> : vector<8xf32>
    %63 = vector.multi_reduction <add>, %62, %cst_29 [1] : vector<8x32xf32> to vector<8xf32>
    %64 = vector.shape_cast %63 : vector<8xf32> to vector<8x1xf32>
    %cst_30 = arith.constant 3.200000e+01 : f32
    %65 = vector.broadcast %cst_30 : f32 to vector<8x1xf32>
    %66 = arith.divf %64, %65 : vector<8x1xf32>
    %67 = arith.mulf %61, %61 : vector<8x1xf32>
    %68 = arith.subf %66, %67 : vector<8x1xf32>
    %cst_31 = arith.constant 0.000000e+00 : f32
    %69 = vector.broadcast %cst_31 : f32 to vector<8x1xf32>
    %70 = arith.maximumf %68, %69 : vector<8x1xf32>
    %71 = vector.broadcast %61 : vector<8x1xf32> to vector<8x32xf32>
    %72 = arith.subf %55, %71 : vector<8x32xf32>
    %cst_32 = arith.constant 9.99999974E-6 : f32
    %73 = vector.broadcast %cst_32 : f32 to vector<8x1xf32>
    %74 = arith.addf %70, %73 : vector<8x1xf32>
    %75 = math.rsqrt %74 : vector<8x1xf32>
    %76 = vector.broadcast %75 : vector<8x1xf32> to vector<8x32xf32>
    %77 = arith.mulf %72, %76 : vector<8x32xf32>
    %78 = vector.broadcast %56 : vector<1x32xf32> to vector<8x32xf32>
    %79 = arith.mulf %77, %78 : vector<8x32xf32>
    %80 = vector.broadcast %57 : vector<1x32xf32> to vector<8x32xf32>
    %81 = arith.addf %79, %80 : vector<8x32xf32>
    %c0_33 = arith.constant 0 : index
    %c0_34 = arith.constant 0 : index
    %82 = vector.load %arg12[%c0_33, %c0_34] : memref<8x32xf32, #tpu.memory_space<vmem>>, vector<8x32xf32>
    tpu.vector_store %arg12[%c0_33, %c0_34], %81 {strides = array<i32>} : memref<8x32xf32, #tpu.memory_space<vmem>>, vector<8x32xf32>,
    %cst_35 = arith.constant 0.000000e+00 : f32
    %83 = vector.broadcast %cst_35 : f32 to vector<8x32xf32>
    %84 = arith.maximumf %81, %83 : vector<8x32xf32>
    %c0_36 = arith.constant 0 : index
    %c0_37 = arith.constant 0 : index
    %c0_38 = arith.constant 0 : index
    %85 = vector.load %arg5[%c0_36, %c0_37, %c0_38] : memref<2x32x32xbf16, #tpu.memory_space<vmem>>, vector<1x32x32xbf16>
    %86 = vector.shape_cast %85 : vector<1x32x32xbf16> to vector<32x32xbf16>
    %87 = arith.truncf %84 : vector<8x32xf32> to vector<8x32xbf16>
    %cst_39 = arith.constant dense<0.000000e+00> : vector<8x32xf32>
    %88 = tpu.matmul %87, %86, %cst_39 {dimension_numbers = #tpu.dot_dimension_numbers<[1], [0], [0], [1], [0, 0, 1, 1], [], []>} : vector<8x32xbf16>, vector<32x32xbf16>, vector<8x32xf32> -> vector<8x32xf32>
    %c0_40 = arith.constant 0 : index
    %c0_41 = arith.constant 0 : index
    %89 = vector.load %arg13[%c0_40, %c0_41] : memref<8x32xf32, #tpu.memory_space<vmem>>, vector<8x32xf32>
    %90 = arith.addf %88, %89 : vector<8x32xf32>
    %cst_42 = arith.constant 0.000000e+00 : f32
    %91 = vector.broadcast %cst_42 : f32 to vector<8x32xf32>
    %92 = arith.maximumf %90, %91 : vector<8x32xf32>
    %c0_43 = arith.constant 0 : index
    %c0_44 = arith.constant 0 : index
    %c0_45 = arith.constant 0 : index
    %93 = vector.load %arg7[%c0_43, %c0_44, %c0_45] : memref<4x32x32xbf16, #tpu.memory_space<vmem>>, vector<1x32x32xbf16>
    %94 = vector.shape_cast %93 : vector<1x32x32xbf16> to vector<32x32xbf16>
    %95 = arith.truncf %92 : vector<8x32xf32> to vector<8x32xbf16>
    %cst_46 = arith.constant dense<0.000000e+00> : vector<8x32xf32>
    %96 = tpu.matmul %95, %94, %cst_46 {dimension_numbers = #tpu.dot_dimension_numbers<[1], [0], [0], [1], [0, 0, 1, 1], [], []>} : vector<8x32xbf16>, vector<32x32xbf16>, vector<8x32xf32> -> vector<8x32xf32>
    %c1_47 = arith.constant 1 : index
    %c0_48 = arith.constant 0 : index
    %97 = vector.load %arg6[%c1_47, %c0_48] : memref<5x32xf32, #tpu.memory_space<vmem>>, vector<1x32xf32>
    %98 = vector.broadcast %97 : vector<1x32xf32> to vector<8x32xf32>
    %99 = arith.addf %96, %98 : vector<8x32xf32>
    %cst_49 = arith.constant 0.000000e+00 : f32
    %100 = vector.broadcast %cst_49 : f32 to vector<8x32xf32>
    %101 = arith.maximumf %99, %100 : vector<8x32xf32>
    %c1_50 = arith.constant 1 : index
    %c0_51 = arith.constant 0 : index
    %c0_52 = arith.constant 0 : index
    %102 = vector.load %arg7[%c1_50, %c0_51, %c0_52] : memref<4x32x32xbf16, #tpu.memory_space<vmem>>, vector<1x32x32xbf16>
    %103 = vector.shape_cast %102 : vector<1x32x32xbf16> to vector<32x32xbf16>
    %104 = arith.truncf %101 : vector<8x32xf32> to vector<8x32xbf16>
    %cst_53 = arith.constant dense<0.000000e+00> : vector<8x32xf32>
    %105 = tpu.matmul %104, %103, %cst_53 {dimension_numbers = #tpu.dot_dimension_numbers<[1], [0], [0], [1], [0, 0, 1, 1], [], []>} : vector<8x32xbf16>, vector<32x32xbf16>, vector<8x32xf32> -> vector<8x32xf32>
    %106 = arith.addf %90, %105 : vector<8x32xf32>
    %c2_54 = arith.constant 2 : index
    %c0_55 = arith.constant 0 : index
    %107 = vector.load %arg6[%c2_54, %c0_55] : memref<5x32xf32, #tpu.memory_space<vmem>>, vector<1x32xf32>
    %108 = vector.broadcast %107 : vector<1x32xf32> to vector<8x32xf32>
    %109 = arith.addf %106, %108 : vector<8x32xf32>
    %cst_56 = arith.constant 0.000000e+00 : f32
    %110 = vector.broadcast %cst_56 : f32 to vector<8x32xf32>
    %111 = arith.maximumf %109, %110 : vector<8x32xf32>
    %c2_57 = arith.constant 2 : index
    %c0_58 = arith.constant 0 : index
    %c0_59 = arith.constant 0 : index
    %112 = vector.load %arg7[%c2_57, %c0_58, %c0_59] : memref<4x32x32xbf16, #tpu.memory_space<vmem>>, vector<1x32x32xbf16>
    %113 = vector.shape_cast %112 : vector<1x32x32xbf16> to vector<32x32xbf16>
    %114 = arith.truncf %111 : vector<8x32xf32> to vector<8x32xbf16>
    %cst_60 = arith.constant dense<0.000000e+00> : vector<8x32xf32>
    %115 = tpu.matmul %114, %113, %cst_60 {dimension_numbers = #tpu.dot_dimension_numbers<[1], [0], [0], [1], [0, 0, 1, 1], [], []>} : vector<8x32xbf16>, vector<32x32xbf16>, vector<8x32xf32> -> vector<8x32xf32>
    %c3_61 = arith.constant 3 : index
    %c0_62 = arith.constant 0 : index
    %116 = vector.load %arg6[%c3_61, %c0_62] : memref<5x32xf32, #tpu.memory_space<vmem>>, vector<1x32xf32>
    %117 = vector.broadcast %116 : vector<1x32xf32> to vector<8x32xf32>
    %118 = arith.addf %115, %117 : vector<8x32xf32>
    %cst_63 = arith.constant 0.000000e+00 : f32
    %119 = vector.broadcast %cst_63 : f32 to vector<8x32xf32>
    %120 = arith.maximumf %118, %119 : vector<8x32xf32>
    %c3_64 = arith.constant 3 : index
    %c0_65 = arith.constant 0 : index
    %c0_66 = arith.constant 0 : index
    %121 = vector.load %arg7[%c3_64, %c0_65, %c0_66] : memref<4x32x32xbf16, #tpu.memory_space<vmem>>, vector<1x32x32xbf16>
    %122 = vector.shape_cast %121 : vector<1x32x32xbf16> to vector<32x32xbf16>
    %123 = arith.truncf %120 : vector<8x32xf32> to vector<8x32xbf16>
    %cst_67 = arith.constant dense<0.000000e+00> : vector<8x32xf32>
    %124 = tpu.matmul %123, %122, %cst_67 {dimension_numbers = #tpu.dot_dimension_numbers<[1], [0], [0], [1], [0, 0, 1, 1], [], []>} : vector<8x32xbf16>, vector<32x32xbf16>, vector<8x32xf32> -> vector<8x32xf32>
    %125 = arith.addf %109, %124 : vector<8x32xf32>
    %c4_68 = arith.constant 4 : index
    %c0_69 = arith.constant 0 : index
    %126 = vector.load %arg6[%c4_68, %c0_69] : memref<5x32xf32, #tpu.memory_space<vmem>>, vector<1x32xf32>
    %127 = vector.broadcast %126 : vector<1x32xf32> to vector<8x32xf32>
    %128 = arith.addf %125, %127 : vector<8x32xf32>
    %c0_70 = arith.constant 0 : index
    %c0_71 = arith.constant 0 : index
    %129 = vector.load %arg8[%c0_70, %c0_71] : memref<32x128xbf16, #tpu.memory_space<vmem>>, vector<32x128xbf16>
    %130 = arith.truncf %81 : vector<8x32xf32> to vector<8x32xbf16>
    %cst_72 = arith.constant dense<0.000000e+00> : vector<8x128xf32>
    %131 = tpu.matmul %130, %129, %cst_72 {dimension_numbers = #tpu.dot_dimension_numbers<[1], [0], [0], [1], [0, 0, 1, 1], [], []>} : vector<8x32xbf16>, vector<32x128xbf16>, vector<8x128xf32> -> vector<8x128xf32>
    %cst_73 = arith.constant 0.000000e+00 : f32
    %132 = vector.broadcast %cst_73 : f32 to vector<8x32xf32>
    %133 = arith.maximumf %128, %132 : vector<8x32xf32>
    %c0_74 = arith.constant 0 : index
    %c0_75 = arith.constant 0 : index
    %134 = vector.load %arg9[%c0_74, %c0_75] : memref<32x128xbf16, #tpu.memory_space<vmem>>, vector<32x128xbf16>
    %135 = arith.truncf %133 : vector<8x32xf32> to vector<8x32xbf16>
    %cst_76 = arith.constant dense<0.000000e+00> : vector<8x128xf32>
    %136 = tpu.matmul %135, %134, %cst_76 {dimension_numbers = #tpu.dot_dimension_numbers<[1], [0], [0], [1], [0, 0, 1, 1], [], []>} : vector<8x32xbf16>, vector<32x128xbf16>, vector<8x128xf32> -> vector<8x128xf32>
    %137 = arith.addf %131, %136 : vector<8x128xf32>
    %c0_77 = arith.constant 0 : index
    %c0_78 = arith.constant 0 : index
    %138 = vector.load %arg10[%c0_77, %c0_78] : memref<1x128xf32, #tpu.memory_space<vmem>>, vector<1x128xf32>
    %139 = vector.broadcast %138 : vector<1x128xf32> to vector<8x128xf32>
    %140 = arith.addf %137, %139 : vector<8x128xf32>
    %c0_79 = arith.constant 0 : index
    %c0_80 = arith.constant 0 : index
    %c0_81 = arith.constant 0 : index
    %141 = vector.load %arg11[%c0_79, %c0_80, %c0_81] : memref<1x8x128xf32, #tpu.memory_space<vmem>>, vector<1x8x128xf32>
    %142 = vector.shape_cast %141 : vector<1x8x128xf32> to vector<8x128xf32>
    %143 = vector.shape_cast %140 : vector<8x128xf32> to vector<1x8x128xf32>
    tpu.vector_store %arg11[%c0_79, %c0_80, %c0_81], %143 {strides = array<i32>} : memref<1x8x128xf32, #tpu.memory_space<vmem>>, vector<1x8x128xf32>,
    return
  }
  func.func @transform_0(%arg0: i32, %arg1: i32) -> (i32, i32) {
    %c0_i32 = arith.constant 0 : i32
    %c0_i32_0 = arith.constant 0 : i32
    return %arg0, %c0_i32 : i32, i32
  }
  func.func @transform_1(%arg0: i32, %arg1: i32) -> (i32, i32) {
    %c0_i32 = arith.constant 0 : i32
    %c0_i32_0 = arith.constant 0 : i32
    %c0_i32_1 = arith.constant 0 : i32
    return %c0_i32, %c0_i32_0 : i32, i32
  }
  func.func @transform_2(%arg0: i32, %arg1: i32) -> (i32, i32, i32) {
    %c0_i32 = arith.constant 0 : i32
    %c0_i32_0 = arith.constant 0 : i32
    %c0_i32_1 = arith.constant 0 : i32
    %c0_i32_2 = arith.constant 0 : i32
    return %c0_i32, %c0_i32_0, %c0_i32_1 : i32, i32, i32
  }
  func.func @transform_3(%arg0: i32, %arg1: i32) -> (i32, i32, i32) {
    %c0_i32 = arith.constant 0 : i32
    %c0_i32_0 = arith.constant 0 : i32
    %c0_i32_1 = arith.constant 0 : i32
    %c0_i32_2 = arith.constant 0 : i32
    return %c0_i32, %c0_i32_0, %c0_i32_1 : i32, i32, i32
  }
  func.func @transform_4(%arg0: i32, %arg1: i32) -> (i32, i32) {
    %c0_i32 = arith.constant 0 : i32
    %c0_i32_0 = arith.constant 0 : i32
    %c0_i32_1 = arith.constant 0 : i32
    return %c0_i32, %c0_i32_0 : i32, i32
  }
  func.func @transform_5(%arg0: i32, %arg1: i32) -> (i32, i32, i32) {
    %c0_i32 = arith.constant 0 : i32
    %c0_i32_0 = arith.constant 0 : i32
    %c0_i32_1 = arith.constant 0 : i32
    %c0_i32_2 = arith.constant 0 : i32
    return %c0_i32, %c0_i32_0, %c0_i32_1 : i32, i32, i32
  }
  func.func @transform_6(%arg0: i32, %arg1: i32) -> (i32, i32) {
    %c0_i32 = arith.constant 0 : i32
    %c0_i32_0 = arith.constant 0 : i32
    %c0_i32_1 = arith.constant 0 : i32
    return %c0_i32, %c0_i32_0 : i32, i32
  }
  func.func @transform_7(%arg0: i32, %arg1: i32) -> (i32, i32) {
    %c0_i32 = arith.constant 0 : i32
    %c0_i32_0 = arith.constant 0 : i32
    %c0_i32_1 = arith.constant 0 : i32
    return %c0_i32, %c0_i32_0 : i32, i32
  }
  func.func @transform_8(%arg0: i32, %arg1: i32) -> (i32, i32) {
    %c0_i32 = arith.constant 0 : i32
    %c0_i32_0 = arith.constant 0 : i32
    %c0_i32_1 = arith.constant 0 : i32
    return %c0_i32, %c0_i32_0 : i32, i32
  }
  func.func @transform_9(%arg0: i32, %arg1: i32) -> (i32, i32, i32) {
    %c0_i32 = arith.constant 0 : i32
    %c0_i32_0 = arith.constant 0 : i32
    return %arg1, %arg0, %c0_i32 : i32, i32, i32
  }
}

module attributes {stable_mosaic.version = 11 : i64} {
  func.func @_ln_packed_kernel(%arg0: i32, %arg1: memref<16x128xf32, #tpu.memory_space<vmem>>, %arg2: memref<1x128xf32, #tpu.memory_space<vmem>>, %arg3: memref<1x128xf32, #tpu.memory_space<vmem>>, %arg4: memref<128x128xf32, #tpu.memory_space<vmem>>, %arg5: memref<16x128xf32, #tpu.memory_space<vmem>>) attributes {dimension_semantics = [#tpu.dimension_semantics<parallel>], iteration_bounds = array<i64: 2>, scalar_prefetch = 0 : i64, scratch_operands = 0 : i64, tpu.core_type = #tpu.core_type<tc>, window_params = [{transform_indices = @transform_0, window_bounds = array<i64: 16, 128>}, {pipeline_mode = #tpu.pipeline_mode<synchronous>, transform_indices = @transform_1, window_bounds = array<i64: 1, 128>}, {pipeline_mode = #tpu.pipeline_mode<synchronous>, transform_indices = @transform_2, window_bounds = array<i64: 1, 128>}, {pipeline_mode = #tpu.pipeline_mode<synchronous>, transform_indices = @transform_3, window_bounds = array<i64: 128, 128>}, {transform_indices = @transform_4, window_bounds = array<i64: 16, 128>}]} {
    %c0 = arith.constant 0 : index
    %c0_0 = arith.constant 0 : index
    %0 = vector.load %arg1[%c0, %c0_0] : memref<16x128xf32, #tpu.memory_space<vmem>>, vector<16x128xf32>
    %c0_1 = arith.constant 0 : index
    %c0_2 = arith.constant 0 : index
    %1 = vector.load %arg4[%c0_1, %c0_2] : memref<128x128xf32, #tpu.memory_space<vmem>>, vector<128x128xf32>
    %cst = arith.constant dense<0.000000e+00> : vector<16x128xf32>
    %2 = tpu.matmul %0, %1, %cst {dimension_numbers = #tpu.dot_dimension_numbers<[1], [0], [0], [1], [0, 0, 1, 1], [], []>} : vector<16x128xf32>, vector<128x128xf32>, vector<16x128xf32> -> vector<16x128xf32>
    %3 = arith.mulf %0, %0 : vector<16x128xf32>
    %cst_3 = arith.constant dense<0.000000e+00> : vector<16x128xf32>
    %4 = tpu.matmul %3, %1, %cst_3 {dimension_numbers = #tpu.dot_dimension_numbers<[1], [0], [0], [1], [0, 0, 1, 1], [], []>} : vector<16x128xf32>, vector<128x128xf32>, vector<16x128xf32> -> vector<16x128xf32>
    %5 = arith.mulf %2, %2 : vector<16x128xf32>
    %6 = arith.subf %4, %5 : vector<16x128xf32>
    %cst_4 = arith.constant 0.000000e+00 : f32
    %7 = vector.broadcast %cst_4 : f32 to vector<16x128xf32>
    %8 = arith.maximumf %6, %7 : vector<16x128xf32>
    %9 = arith.subf %0, %2 : vector<16x128xf32>
    %cst_5 = arith.constant 9.99999974E-6 : f32
    %10 = vector.broadcast %cst_5 : f32 to vector<16x128xf32>
    %11 = arith.addf %8, %10 : vector<16x128xf32>
    %12 = math.rsqrt %11 : vector<16x128xf32>
    %13 = arith.mulf %9, %12 : vector<16x128xf32>
    %c0_6 = arith.constant 0 : index
    %c0_7 = arith.constant 0 : index
    %14 = vector.load %arg2[%c0_6, %c0_7] : memref<1x128xf32, #tpu.memory_space<vmem>>, vector<1x128xf32>
    %15 = vector.broadcast %14 : vector<1x128xf32> to vector<16x128xf32>
    %16 = arith.mulf %13, %15 : vector<16x128xf32>
    %c0_8 = arith.constant 0 : index
    %c0_9 = arith.constant 0 : index
    %17 = vector.load %arg3[%c0_8, %c0_9] : memref<1x128xf32, #tpu.memory_space<vmem>>, vector<1x128xf32>
    %18 = vector.broadcast %17 : vector<1x128xf32> to vector<16x128xf32>
    %19 = arith.addf %16, %18 : vector<16x128xf32>
    %c0_10 = arith.constant 0 : index
    %c0_11 = arith.constant 0 : index
    %20 = vector.load %arg5[%c0_10, %c0_11] : memref<16x128xf32, #tpu.memory_space<vmem>>, vector<16x128xf32>
    tpu.vector_store %arg5[%c0_10, %c0_11], %19 {strides = array<i32>} : memref<16x128xf32, #tpu.memory_space<vmem>>, vector<16x128xf32>,
    return
  }
  func.func @transform_0(%arg0: i32) -> (i32, i32) {
    %c0_i32 = arith.constant 0 : i32
    %c0_i32_0 = arith.constant 0 : i32
    return %arg0, %c0_i32 : i32, i32
  }
  func.func @transform_1(%arg0: i32) -> (i32, i32) {
    %c0_i32 = arith.constant 0 : i32
    %c0_i32_0 = arith.constant 0 : i32
    %c0_i32_1 = arith.constant 0 : i32
    return %c0_i32, %c0_i32_0 : i32, i32
  }
  func.func @transform_2(%arg0: i32) -> (i32, i32) {
    %c0_i32 = arith.constant 0 : i32
    %c0_i32_0 = arith.constant 0 : i32
    %c0_i32_1 = arith.constant 0 : i32
    return %c0_i32, %c0_i32_0 : i32, i32
  }
  func.func @transform_3(%arg0: i32) -> (i32, i32) {
    %c0_i32 = arith.constant 0 : i32
    %c0_i32_0 = arith.constant 0 : i32
    %c0_i32_1 = arith.constant 0 : i32
    return %c0_i32, %c0_i32_0 : i32, i32
  }
  func.func @transform_4(%arg0: i32) -> (i32, i32) {
    %c0_i32 = arith.constant 0 : i32
    %c0_i32_0 = arith.constant 0 : i32
    return %arg0, %c0_i32 : i32, i32
  }
}

</mosaic_0001>

<llo_original>
// kernel: custom-call
$region0: #{custom-call}
  %s0 = inlined_call_operand.vmem [shape: f32[2,16,4,4], index: 0, kind: output, shape index: {}]

// kernel: structure_module_forward.2
$region0: #{structure_module_forward.2}
  #allocation0 [shape = 'u32[]', space=smem, size = 0x4, offset = 0x4, fixed_abs, tag = 'smem constant byte address 0x4 - core index']
  #allocation1 [shape = 'u32[144,128]{1,0:T(1,128)}', space=vmem, size = 0x12000, scoped, tag = 'internal scratch']
  #allocation2 [shape = 'f32[8,32]{1,0:T(8,128)}', space=vmem, size = 0x1000, scoped, tag = 'scratch operand']
  #allocation3 [shape = 'f32[8,32]{1,0:T(8,128)}', space=vmem, size = 0x1000, scoped, tag = 'scratch operand']
  %s0 = inlined_call_operand.hbm [shape: f32[16,32], index: 0, kind: input, shape index: {}]
  %s1 = inlined_call_operand.vmem [shape: f32[10,32], index: 1, kind: input, shape index: {}]
  %s2 = inlined_call_operand.hbm [shape: bf16[4,32,32], index: 2, kind: input, shape index: {}]
  %s3 = inlined_call_operand.hbm [shape: bf16[2,32,32], index: 3, kind: input, shape index: {}]
  %s4 = inlined_call_operand.hbm [shape: f32[5,32], index: 4, kind: input, shape index: {}]
  %s5 = inlined_call_operand.hbm [shape: bf16[4,32,32], index: 5, kind: input, shape index: {}]
  %s6 = inlined_call_operand.hbm [shape: bf16[32,128], index: 6, kind: input, shape index: {}]
  %s7 = inlined_call_operand.hbm [shape: bf16[32,128], index: 7, kind: input, shape index: {}]
  %s8 = inlined_call_operand.vmem [shape: f32[1,128], index: 8, kind: input, shape index: {}]
  %s9 = inlined_call_operand.vmem [shape: f32[2,16,128], index: 9, kind: output, shape index: {}]
  %s10 = sld [smem:[#allocation0]]
  $region101: #{structure_module_forward.2} parent=0
    _
  %s12 = ssub.s32 1, %s10
  %s13 = scalar_select 0, %s12, %s10
  $region1: #{structure_module_forward.2} parent=0
    #allocation4 [shape = 'u8[8192]{0}', space=vmem, size = 0x2000, scoped, tag = 'input window, operand 0']
    #allocation5 [shape = 's32[2]{0}', space=sflag, size = 0x8, scoped, tag = 'scoped memory for structure_module_forward.2']
    #allocation6 [shape = 'u8[32768]{0}', space=vmem, size = 0x8000, scoped, tag = 'input window, operand 2, single buffered']
    #allocation7 [shape = 's32[1]{0}', space=sflag, size = 0x4, scoped, tag = 'scoped memory for structure_module_forward.2']
    #allocation8 [shape = 'u8[16384]{0}', space=vmem, size = 0x4000, scoped, tag = 'input window, operand 3, single buffered']
    #allocation9 [shape = 'u8[4096]{0}', space=vmem, size = 0x1000, scoped, tag = 'input window, operand 4, single buffered']
    #allocation10 [shape = 's32[1]{0}', space=sflag, size = 0x4, scoped, tag = 'scoped memory for structure_module_forward.2']
    #allocation11 [shape = 'u8[32768]{0}', space=vmem, size = 0x8000, scoped, tag = 'input window, operand 5, single buffered']
    #allocation12 [shape = 'u8[8192]{0}', space=vmem, size = 0x2000, scoped, tag = 'input window, operand 6, single buffered']
    #allocation13 [shape = 's32[1]{0}', space=sflag, size = 0x4, scoped, tag = 'scoped memory for structure_module_forward.2']
    #allocation14 [shape = 'u8[8192]{0}', space=vmem, size = 0x2000, scoped, tag = 'input window, operand 7, single buffered']
    %14 = vsyncpa [#allocation5], 0
    %s15 = scalar_lea.sflag [#allocation5], 1
    %16 = vsyncpa %s15, 0
    %17 = vsyncpa [#allocation7], 0
    %18 = vsyncpa [#allocation10], 0
    %19 = vsyncpa [#allocation13], 0
    loop: start=0, step=1, limit=6
    $region2: #{structure_module_forward.2} parent=1 // loop_pre_header
      _
    $region3: #{structure_module_forward.2} parent=1 // loop_header
      %s21 = sphi 0, %s25
      %p22 = scmp.ge.s32.totalorder %s21, 6
      %s28 = sphi 0, %s40
      %s29 = sphi 0, %s36
      %s30 = sphi 0, %s28
      %s31 = sphi 0, %s29
      %s32 = sphi 0, %s30
      %s33 = sphi 0, %s31
      %s43 = sphi 0, %s45
      %s46 = sphi 0, %s43
      %s47 = sphi 0, %s46
      %s63 = sphi 0, %s47
      %s67 = sphi 0, %s67
      %s69 = sphi 0, %s67
      %s70 = sphi 0, %s69
      %s84 = sphi 0, %s70
      %s88 = sphi 0, %s88
      %s90 = sphi 0, %s88
      %s91 = sphi 0, %s90
      %s105 = sphi 0, %s91
      %s109 = sphi 0, %s109
      %s111 = sphi 0, %s109
      %s112 = sphi 0, %s111
      %s126 = sphi 0, %s112
      %s130 = sphi 0, %s130
      %s132 = sphi 0, %s130
      %s133 = sphi 0, %s132
      %s147 = sphi 0, %s133
      %s151 = sphi 0, %s151
      %s153 = sphi 0, %s151
      %s154 = sphi 0, %s153
      %s168 = sphi 0, %s154
      %s172 = sphi 0, %s172
      %s174 = sphi 0, %s172
      %s175 = sphi 0, %s174
      %s189 = sphi 0, %s175
      %s193 = sphi 0, %s193
      %s195 = sphi 0, %s193
      %s196 = sphi 0, %s195
      %s210 = sphi 0, %s196
      %s214 = sphi 0, %s214
      %s216 = sphi 0, %s214
      %s217 = sphi 0, %s216
      %s231 = sphi 0, %s217
      %s239 = sphi 0, %s241
      %s242 = sphi 0, %s239
      %s243 = sphi 0, %s242
      %s259 = sphi 0, %s243
    $region4: #{structure_module_forward.2} parent=1 // loop_header_branch
      %24 = sbr.rel (%p22) target = $region8
    $region5: #{structure_module_forward.2} parent=1 // loop_body
      %s26 = ssub.s32 %s21, 1
      %s27 = ssub.s32 %s21, 2
      %s34 = sadd.s32 1, %s29
      %p35 = scmp.ge.s32.totalorder %s34, 2
      %s36 = scalar_select %p35, 0, %s34
      %s37 = sadd.s32 1, %s28
      %s38 = scalar_select %p35, %s37, %s28
      %p39 = scmp.ge.s32.totalorder %s38, 2
      %s40 = scalar_select %p39, 0, %s38
      %s41 = ssub.s32 %s28, %s40
      %p42 = scmp.eq.s32.totalorder %s41, 0
      %s44 = sadd.s32 %s43, 1
      %s45 = scalar_select %p42, %s43, %s44
      %p48 = pneg %p42
      %p49 = scmp.eq.s32.totalorder %s21, 3
      %p50 = por %p48, %p49
      %p51 = scmp.ne.s32.totalorder %s43, %s46
      %p52 = scmp.eq.s32.totalorder %s21, 0
      %p53 = por %p51, %p52
      %p54 = scmp.ne.s32.totalorder %s43, %s46
      %p55 = scmp.eq.s32.totalorder %s26, 3
      %p56 = por %p54, %p55
      %p57 = scmp.ne.s32.totalorder %s46, %s47
      %p58 = scmp.eq.s32.totalorder %s26, 0
      %p59 = por %p57, %p58
      %p60 = scmp.ne.s32.totalorder %s46, %s47
      %p61 = scmp.eq.s32.totalorder %s27, 3
      %p62 = por %p60, %p61
      %p64 = scmp.ne.s32.totalorder %s47, %s63
      %p65 = scmp.eq.s32.totalorder %s27, 0
      %p66 = por %p64, %p65
      %s68 = sadd.s32 %s67, 1
      %p71 = scmp.eq.s32.totalorder %s21, 3
      %p72 = scmp.ne.s32.totalorder %s67, %s69
      %p73 = scmp.eq.s32.totalorder %s21, 0
      %p74 = por %p72, %p73
      %p75 = scmp.ne.s32.totalorder %s67, %s69
      %p76 = scmp.eq.s32.totalorder %s26, 3
      %p77 = por %p75, %p76
      %p78 = scmp.ne.s32.totalorder %s69, %s70
      %p79 = scmp.eq.s32.totalorder %s26, 0
      %p80 = por %p78, %p79
      %p81 = scmp.ne.s32.totalorder %s69, %s70
      %p82 = scmp.eq.s32.totalorder %s27, 3
      %p83 = por %p81, %p82
      %p85 = scmp.ne.s32.totalorder %s70, %s84
      %p86 = scmp.eq.s32.totalorder %s27, 0
      %p87 = por %p85, %p86
      %s89 = sadd.s32 %s88, 1
      %p92 = scmp.eq.s32.totalorder %s21, 3
      %p93 = scmp.ne.s32.totalorder %s88, %s90
      %p94 = scmp.eq.s32.totalorder %s21, 0
      %p95 = por %p93, %p94
      %p96 = scmp.ne.s32.totalorder %s88, %s90
      %p97 = scmp.eq.s32.totalorder %s26, 3
      %p98 = por %p96, %p97
      %p99 = scmp.ne.s32.totalorder %s90, %s91
      %p100 = scmp.eq.s32.totalorder %s26, 0
      %p101 = por %p99, %p100
      %p102 = scmp.ne.s32.totalorder %s90, %s91
      %p103 = scmp.eq.s32.totalorder %s27, 3
      %p104 = por %p102, %p103
      %p106 = scmp.ne.s32.totalorder %s91, %s105
      %p107 = scmp.eq.s32.totalorder %s27, 0
      %p108 = por %p106, %p107
      %s110 = sadd.s32 %s109, 1
      %p113 = scmp.eq.s32.totalorder %s21, 3
      %p114 = scmp.ne.s32.totalorder %s109, %s111
      %p115 = scmp.eq.s32.totalorder %s21, 0
      %p116 = por %p114, %p115
      %p117 = scmp.ne.s32.totalorder %s109, %s111
      %p118 = scmp.eq.s32.totalorder %s26, 3
      %p119 = por %p117, %p118
      %p120 = scmp.ne.s32.totalorder %s111, %s112
      %p121 = scmp.eq.s32.totalorder %s26, 0
      %p122 = por %p120, %p121
      %p123 = scmp.ne.s32.totalorder %s111, %s112
      %p124 = scmp.eq.s32.totalorder %s27, 3
      %p125 = por %p123, %p124
      %p127 = scmp.ne.s32.totalorder %s112, %s126
      %p128 = scmp.eq.s32.totalorder %s27, 0
      %p129 = por %p127, %p128
      %s131 = sadd.s32 %s130, 1
      %p134 = scmp.eq.s32.totalorder %s21, 3
      %p135 = scmp.ne.s32.totalorder %s130, %s132
      %p136 = scmp.eq.s32.totalorder %s21, 0
      %p137 = por %p135, %p136
      %p138 = scmp.ne.s32.totalorder %s130, %s132
      %p139 = scmp.eq.s32.totalorder %s26, 3
      %p140 = por %p138, %p139
      %p141 = scmp.ne.s32.totalorder %s132, %s133
      %p142 = scmp.eq.s32.totalorder %s26, 0
      %p143 = por %p141, %p142
      %p144 = scmp.ne.s32.totalorder %s132, %s133
      %p145 = scmp.eq.s32.totalorder %s27, 3
      %p146 = por %p144, %p145
      %p148 = scmp.ne.s32.totalorder %s133, %s147
      %p149 = scmp.eq.s32.totalorder %s27, 0
      %p150 = por %p148, %p149
      %s152 = sadd.s32 %s151, 1
      %p155 = scmp.eq.s32.totalorder %s21, 3
      %p156 = scmp.ne.s32.totalorder %s151, %s153
      %p157 = scmp.eq.s32.totalorder %s21, 0
      %p158 = por %p156, %p157
      %p159 = scmp.ne.s32.totalorder %s151, %s153
      %p160 = scmp.eq.s32.totalorder %s26, 3
      %p161 = por %p159, %p160
      %p162 = scmp.ne.s32.totalorder %s153, %s154
      %p163 = scmp.eq.s32.totalorder %s26, 0
      %p164 = por %p162, %p163
      %p165 = scmp.ne.s32.totalorder %s153, %s154
      %p166 = scmp.eq.s32.totalorder %s27, 3
      %p167 = por %p165, %p166
      %p169 = scmp.ne.s32.totalorder %s154, %s168
      %p170 = scmp.eq.s32.totalorder %s27, 0
      %p171 = por %p169, %p170
      %s173 = sadd.s32 %s172, 1
      %p176 = scmp.eq.s32.totalorder %s21, 3
      %p177 = scmp.ne.s32.totalorder %s172, %s174
      %p178 = scmp.eq.s32.totalorder %s21, 0
      %p179 = por %p177, %p178
      %p180 = scmp.ne.s32.totalorder %s172, %s174
      %p181 = scmp.eq.s32.totalorder %s26, 3
      %p182 = por %p180, %p181
      %p183 = scmp.ne.s32.totalorder %s174, %s175
      %p184 = scmp.eq.s32.totalorder %s26, 0
      %p185 = por %p183, %p184
      %p186 = scmp.ne.s32.totalorder %s174, %s175
      %p187 = scmp.eq.s32.totalorder %s27, 3
      %p188 = por %p186, %p187
      %p190 = scmp.ne.s32.totalorder %s175, %s189
      %p191 = scmp.eq.s32.totalorder %s27, 0
      %p192 = por %p190, %p191
      %s194 = sadd.s32 %s193, 1
      %p197 = scmp.eq.s32.totalorder %s21, 3
      %p198 = scmp.ne.s32.totalorder %s193, %s195
      %p199 = scmp.eq.s32.totalorder %s21, 0
      %p200 = por %p198, %p199
      %p201 = scmp.ne.s32.totalorder %s193, %s195
      %p202 = scmp.eq.s32.totalorder %s26, 3
      %p203 = por %p201, %p202
      %p204 = scmp.ne.s32.totalorder %s195, %s196
      %p205 = scmp.eq.s32.totalorder %s26, 0
      %p206 = por %p204, %p205
      %p207 = scmp.ne.s32.totalorder %s195, %s196
      %p208 = scmp.eq.s32.totalorder %s27, 3
      %p209 = por %p207, %p208
      %p211 = scmp.ne.s32.totalorder %s196, %s210
      %p212 = scmp.eq.s32.totalorder %s27, 0
      %p213 = por %p211, %p212
      %s215 = sadd.s32 %s214, 1
      %p218 = scmp.eq.s32.totalorder %s21, 3
      %p219 = scmp.ne.s32.totalorder %s214, %s216
      %p220 = scmp.eq.s32.totalorder %s21, 0
      %p221 = por %p219, %p220
      %p222 = scmp.ne.s32.totalorder %s214, %s216
      %p223 = scmp.eq.s32.totalorder %s26, 3
      %p224 = por %p222, %p223
      %p225 = scmp.ne.s32.totalorder %s216, %s217
      %p226 = scmp.eq.s32.totalorder %s26, 0
      %p227 = por %p225, %p226
      %p228 = scmp.ne.s32.totalorder %s216, %s217
      %p229 = scmp.eq.s32.totalorder %s27, 3
      %p230 = por %p228, %p229
      %p232 = scmp.ne.s32.totalorder %s217, %s231
      %p233 = scmp.eq.s32.totalorder %s27, 0
      %p234 = por %p232, %p233
      %s235 = ssub.s32 %s29, %s36
      %s236 = ssub.s32 %s28, %s40
      %s237 = sor.u32 %s235, %s236
      %p238 = scmp.eq.s32.totalorder %s237, 0
      %s240 = sadd.s32 %s239, 1
      %s241 = scalar_select %p238, %s239, %s240
      %p244 = pneg %p238
      %p245 = scmp.eq.s32.totalorder %s21, 3
      %p246 = por %p244, %p245
      %p247 = scmp.ne.s32.totalorder %s239, %s242
      %p248 = scmp.eq.s32.totalorder %s21, 0
      %p249 = por %p247, %p248
      %p250 = scmp.ne.s32.totalorder %s239, %s242
      %p251 = scmp.eq.s32.totalorder %s26, 3
      %p252 = por %p250, %p251
      %p253 = scmp.ne.s32.totalorder %s242, %s243
      %p254 = scmp.eq.s32.totalorder %s26, 0
      %p255 = por %p253, %p254
      %p256 = scmp.ne.s32.totalorder %s242, %s243
      %p257 = scmp.eq.s32.totalorder %s27, 3
      %p258 = por %p256, %p257
      %p260 = scmp.ne.s32.totalorder %s243, %s259
      %p261 = scmp.eq.s32.totalorder %s27, 0
      %p262 = por %p260, %p261
      %p263 = scmp.le.s32.totalorder 1, %s21
      %p264 = scmp.lt.s32.totalorder %s21, 5
      %p265 = pnand %p263, %p264
      %p266 = pneg %p265
      // Predicated region
      $region9: #{structure_module_forward.2} parent=5 // pred_check
        _
      $region10: #{structure_module_forward.2} parent=5 // pred_check_branch
        %268 = sbr.rel (%p265) target = $region12
      $region11: #{structure_module_forward.2} parent=5 // pred_region
        %s269 = ssub.s32 %s21, 1
        // Predicated region
        $region13: #{structure_module_forward.2} parent=11 // pred_check
          %p270 = pneg %p80
        $region14: #{structure_module_forward.2} parent=11 // pred_check_branch
          %272 = sbr.rel (%p270) target = $region16
        $region15: #{structure_module_forward.2} parent=11 // pred_region
          _
        $region16: #{structure_module_forward.2} parent=11 // pred_fallthru
          _
        // Predicated region
        $region17: #{structure_module_forward.2} parent=11 // pred_check
          %p273 = pneg %p101
        $region18: #{structure_module_forward.2} parent=11 // pred_check_branch
          %275 = sbr.rel (%p273) target = $region20
        $region19: #{structure_module_forward.2} parent=11 // pred_region
          %s277 = ssub.s32 1024, 1024
          %278 = vsyncadd [#allocation7], %s277
          %s279 = sshll.u32 [#allocation6], 4
          %s280 = int_to_ptr.vmem [resolvable:$true] %s279
          %285 = dma.hbm_to_vmem [thread:$0]  %s2, 1024, %s280, [#allocation7], 64, 64, 4
        $region20: #{structure_module_forward.2} parent=11 // pred_fallthru
          _
        // Predicated region
        $region21: #{structure_module_forward.2} parent=11 // pred_check
          %p286 = pneg %p122
        $region22: #{structure_module_forward.2} parent=11 // pred_check_branch
          %288 = sbr.rel (%p286) target = $region24
        $region23: #{structure_module_forward.2} parent=11 // pred_region
          %s290 = ssub.s32 512, 512
          %291 = vsyncadd [#allocation7], %s290
          %s292 = sshll.u32 [#allocation8], 4
          %s293 = int_to_ptr.vmem [resolvable:$true] %s292
          %298 = dma.hbm_to_vmem [thread:$0]  %s3, 512, %s293, [#allocation7], 64, 64, 4
        $region24: #{structure_module_forward.2} parent=11 // pred_fallthru
          _
        // Predicated region
        $region25: #{structure_module_forward.2} parent=11 // pred_check
          %p299 = pneg %p143
        $region26: #{structure_module_forward.2} parent=11 // pred_check_branch
          %301 = sbr.rel (%p299) target = $region28
        $region27: #{structure_module_forward.2} parent=11 // pred_region
          %s303 = ssub.s32 128, 128
          %304 = vsyncadd [#allocation10], %s303
          %s306 = sshll.u32 [#allocation9], 4
          %s307 = int_to_ptr.vmem [resolvable:$true] %s306
          %309 = dma.hbm_to_vmem [thread:$0]  %s4, 128, %s307, [#allocation10]
        $region28: #{structure_module_forward.2} parent=11 // pred_fallthru
          _
        // Predicated region
        $region29: #{structure_module_forward.2} parent=11 // pred_check
          %p310 = pneg %p164
        $region30: #{structure_module_forward.2} parent=11 // pred_check_branch
          %312 = sbr.rel (%p310) target = $region32
        $region31: #{structure_module_forward.2} parent=11 // pred_region
          %s314 = ssub.s32 1024, 1024
          %315 = vsyncadd [#allocation10], %s314
          %s316 = sshll.u32 [#allocation11], 4
          %s317 = int_to_ptr.vmem [resolvable:$true] %s316
          %322 = dma.hbm_to_vmem [thread:$0]  %s5, 1024, %s317, [#allocation10], 64, 64, 4
        $region32: #{structure_module_forward.2} parent=11 // pred_fallthru
          _
        // Predicated region
        $region33: #{structure_module_forward.2} parent=11 // pred_check
          %p323 = pneg %p185
        $region34: #{structure_module_forward.2} parent=11 // pred_check_branch
          %325 = sbr.rel (%p323) target = $region36
        $region35: #{structure_module_forward.2} parent=11 // pred_region
          %s327 = ssub.s32 256, 256
          %328 = vsyncadd [#allocation13], %s327
          %s329 = sshll.u32 [#allocation12], 4
          %s330 = int_to_ptr.vmem [resolvable:$true] %s329
          %335 = dma.hbm_to_vmem [thread:$0]  %s6, 256, %s330, [#allocation13], 64, 64, 4
        $region36: #{structure_module_forward.2} parent=11 // pred_fallthru
          _
        // Predicated region
        $region37: #{structure_module_forward.2} parent=11 // pred_check
          %p336 = pneg %p206
        $region38: #{structure_module_forward.2} parent=11 // pred_check_branch
          %338 = sbr.rel (%p336) target = $region40
        $region39: #{structure_module_forward.2} parent=11 // pred_region
          %s340 = ssub.s32 256, 256
          %341 = vsyncadd [#allocation13], %s340
          %s342 = sshll.u32 [#allocation14], 4
          %s343 = int_to_ptr.vmem [resolvable:$true] %s342
          %348 = dma.hbm_to_vmem [thread:$0]  %s7, 256, %s343, [#allocation13], 64, 64, 4
        $region40: #{structure_module_forward.2} parent=11 // pred_fallthru
          _
        // Predicated region
        $region41: #{structure_module_forward.2} parent=11 // pred_check
          %p349 = pneg %p227
        $region42: #{structure_module_forward.2} parent=11 // pred_check_branch
          %351 = sbr.rel (%p349) target = $region44
        $region43: #{structure_module_forward.2} parent=11 // pred_region
          _
        $region44: #{structure_module_forward.2} parent=11 // pred_fallthru
          _
      $region12: #{structure_module_forward.2} parent=5 // pred_fallthru
        _
      %p352 = scmp.lt.s32.totalorder %s21, 4
      // Predicated region
      $region45: #{structure_module_forward.2} parent=5 // pred_check
        %p353 = pneg %p352
      $region46: #{structure_module_forward.2} parent=5 // pred_check_branch
        %355 = sbr.rel (%p353) target = $region48
      $region47: #{structure_module_forward.2} parent=5 // pred_region
        // Predicated region
        $region49: #{structure_module_forward.2} parent=47 // pred_check
          %p356 = pneg %p53
        $region50: #{structure_module_forward.2} parent=47 // pred_check_branch
          %358 = sbr.rel (%p356) target = $region52
        $region51: #{structure_module_forward.2} parent=47 // pred_region
          %s359 = sand.u32 %s43, 1
          %s360 = scalar_lea.sflag [#allocation5], %s359
          %s361 = sand.u32 %s43, 1
          %s362 = smul.addr %s361, 8
          %s363 = scalar_lea.vmem [#allocation4], %s362
          %s365 = ssub.s32 128, 128
          %366 = vsyncadd %s360, %s365
          %s367 = smul.addr %s28, 128
          %s368 = scalar_lea.hbm %s0, %s367
          %s370 = sshll.u32 %s363, 4
          %s371 = int_to_ptr.vmem [resolvable:$true] %s370
          %373 = dma.hbm_to_vmem [thread:$0]  %s368, 128, %s371, %s360
        $region52: #{structure_module_forward.2} parent=47 // pred_fallthru
          _
      $region48: #{structure_module_forward.2} parent=5 // pred_fallthru
        _
      %p374 = scmp.le.s32.totalorder 1, %s21
      %p375 = scmp.lt.s32.totalorder %s21, 5
      %p376 = pnand %p374, %p375
      %p377 = pneg %p376
      // Predicated region
      $region53: #{structure_module_forward.2} parent=5 // pred_check
        _
      $region54: #{structure_module_forward.2} parent=5 // pred_check_branch
        %379 = sbr.rel (%p376) target = $region56
      $region55: #{structure_module_forward.2} parent=5 // pred_region
        %s380 = ssub.s32 %s21, 1
        %s381 = sand.u32 %s46, 1
        %s382 = scalar_lea.sflag [#allocation5], %s381
        %s383 = sand.u32 %s46, 1
        %s384 = smul.addr %s383, 8
        %s385 = scalar_lea.vmem [#allocation4], %s384
        // Predicated region
        $region57: #{structure_module_forward.2} parent=55 // pred_check
          %p386 = pneg %p59
        $region58: #{structure_module_forward.2} parent=55 // pred_check_branch
          %388 = sbr.rel (%p386) target = $region60
        $region59: #{structure_module_forward.2} parent=55 // pred_region
          %389 = dma.done %s382, 128
        $region60: #{structure_module_forward.2} parent=55 // pred_fallthru
          _
        // Predicated region
        $region61: #{structure_module_forward.2} parent=55 // pred_check
          %p390 = pneg %p101
        $region62: #{structure_module_forward.2} parent=55 // pred_check_branch
          %392 = sbr.rel (%p390) target = $region64
        $region63: #{structure_module_forward.2} parent=55 // pred_region
          %393 = dma.done [#allocation7], 1024
        $region64: #{structure_module_forward.2} parent=55 // pred_fallthru
          _
        // Predicated region
        $region65: #{structure_module_forward.2} parent=55 // pred_check
          %p394 = pneg %p122
        $region66: #{structure_module_forward.2} parent=55 // pred_check_branch
          %396 = sbr.rel (%p394) target = $region68
        $region67: #{structure_module_forward.2} parent=55 // pred_region
          %397 = dma.done [#allocation7], 512
        $region68: #{structure_module_forward.2} parent=55 // pred_fallthru
          _
        // Predicated region
        $region69: #{structure_module_forward.2} parent=55 // pred_check
          %p398 = pneg %p143
        $region70: #{structure_module_forward.2} parent=55 // pred_check_branch
          %400 = sbr.rel (%p398) target = $region72
        $region71: #{structure_module_forward.2} parent=55 // pred_region
          %401 = dma.done [#allocation10], 128
        $region72: #{structure_module_forward.2} parent=55 // pred_fallthru
          _
        // Predicated region
        $region73: #{structure_module_forward.2} parent=55 // pred_check
          %p402 = pneg %p164
        $region74: #{structure_module_forward.2} parent=55 // pred_check_branch
          %404 = sbr.rel (%p402) target = $region76
        $region75: #{structure_module_forward.2} parent=55 // pred_region
          %405 = dma.done [#allocation10], 1024
        $region76: #{structure_module_forward.2} parent=55 // pred_fallthru
          _
        // Predicated region
        $region77: #{structure_module_forward.2} parent=55 // pred_check
          %p406 = pneg %p185
        $region78: #{structure_module_forward.2} parent=55 // pred_check_branch
          %408 = sbr.rel (%p406) target = $region80
        $region79: #{structure_module_forward.2} parent=55 // pred_region
          %409 = dma.done [#allocation13], 256
        $region80: #{structure_module_forward.2} parent=55 // pred_fallthru
          _
        // Predicated region
        $region81: #{structure_module_forward.2} parent=55 // pred_check
          %p410 = pneg %p206
        $region82: #{structure_module_forward.2} parent=55 // pred_check_branch
          %412 = sbr.rel (%p410) target = $region84
        $region83: #{structure_module_forward.2} parent=55 // pred_region
          %413 = dma.done [#allocation13], 256
        $region84: #{structure_module_forward.2} parent=55 // pred_fallthru
          _
        %s414 = sand.u32 %s46, 1
        %s415 = scalar_lea.sflag [#allocation5], %s414
        %s416 = sand.u32 %s46, 1
        %s417 = smul.addr %s416, 8
        %s418 = scalar_lea.vmem [#allocation4], %s417
        %p419 = pneg %p59
        %p420 = pneg %p56
        %p421 = pneg %p80
        %p422 = pneg %p77
        %p423 = pneg %p101
        %p424 = pneg %p98
        %p425 = pneg %p122
        %p426 = pneg %p119
        %p427 = pneg %p143
        %p428 = pneg %p140
        %p429 = pneg %p164
        %p430 = pneg %p161
        %p431 = pneg %p185
        %p432 = pneg %p182
        %p433 = pneg %p206
        %p434 = pneg %p203
        %p435 = pneg %p227
        %p436 = pneg %p224
        %p437 = pneg %p255
        %p438 = pneg %p252
        %p439 = scmp.lt.s32.totalorder %s31, 1
        %s440 = scalar_select %p439, %s31, 1
        %p441 = scmp.lt.s32.totalorder %s30, 1
        %s442 = scalar_select %p441, %s30, 1
        %s443 = smul.addr %s440, 2
        %s444 = sadd.s32 %s442, %s443
        %s445 = smul.addr %s444, 8
        %s446 = scalar_lea.vmem %s9, %s445
        %p447 = scmp.lt.s32.totalorder %s31, 1
        %s448 = scalar_select %p447, %s31, 1
        %p449 = scmp.lt.s32.totalorder %s30, 1
        %s450 = scalar_select %p449, %s30, 1
        %s451 = smul.addr %s448, 2
        %s452 = sadd.s32 %s450, %s451
        %s453 = smul.addr %s452, 8
        %s454 = scalar_lea.vmem %s9, %s453
        %p456 = scmp.eq.s32.totalorder %s31, 0
        // Predicated region
        $region85: #{structure_module_forward.2} parent=55 // pred_check
          %p457 = pneg %p456
        $region86: #{structure_module_forward.2} parent=55 // pred_check_branch
          %459 = sbr.rel (%p457) target = $region88
        $region87: #{structure_module_forward.2} parent=55 // pred_region
          %v460 = vld [vmem:[%s385] sm:$0xff]
          %v461 = vld [vmem:[%s1] sm:$0x1]
          %v462 = vld [vmem:[%s1 + $0x1] sm:$0x1]
          %vm463 = vcmask 261120
          %v464 = vsel %vm463, %v460, 0.0
          %465 = vadd.xlane.f32.xlu0 %v464
          %v466 = vpop.xlane.xlu0 %465
          %v467 = vrcp.pop 32.0
          %v468 = vmul.f32 %v466, %v467
          %v469 = vmul.f32 %v460, %v460
          %v470 = vsel %vm463, %v469, 0.0
          %471 = vadd.xlane.f32.xlu0 %v470
          %v472 = vpop.xlane.xlu0 %471
          %v473 = vmul.f32 %v472, %v467
          %v474 = vmul.f32 %v468, %v468
          %v475 = vsub.f32 %v473, %v474
          %v476 = vmax.f32 %v475, 0.0
          %v477 = vsub.f32 %v460, %v468
          %v478 = vadd.f32 %v476, 1e-05
          %v479 = vrsqrt.pop %v478
          %v480 = vmul.f32 %v477, %v479
          %v481 = vlaneseq
          %v482 = vshrl.u32 %v481, 7
          %v483 = vsub.s32 0, %v482
          %v484 = vrot.slane %v461, %v483
          %v485 = vmul.f32 %v480, %v484
          %v486 = vlaneseq
          %v487 = vshrl.u32 %v486, 7
          %v488 = vsub.s32 0, %v487
          %v489 = vrot.slane %v462, %v488
          %v490 = vadd.f32 %v485, %v489
          %v491 = vld [vmem:[#allocation6] sm:$0xf]
          %v492 = vld [vmem:[#allocation6 + $0x4] sm:$0xf]
          %v493 = vld [vmem:[#allocation6 + $0x8] sm:$0xf]
          %v494 = vld [vmem:[#allocation6 + $0xc] sm:$0xf]
          %v495 = vpack.c.bf16 %v490, %v490
          %v496 = vld [vmem:[%s1 + $0x6] sm:$0x1]
          %v497 = vlaneseq
          %v498 = vshrl.u32 %v497, 7
          %v499 = vsub.s32 0, %v498
          %v500 = vrot.slane %v496, %v499
          %v505 = vunpack.c.l.b16 %v491
          %v506 = vunpack.c.l.b16 %v492
          %v507 = vunpack.c.l.b16 %v493
          %v508 = vunpack.c.l.b16 %v494
          %v509 = vpack.c.b16 %v506, %v505
          %v510 = vpack.c.b16 %v508, %v507
          %v514 = vsel %vm463, %v495, 0
          %516 = vmatprep.subr.bf16.mxu0 0
          %517 = vmatpush1.bf16.msra.mxu0 0
          %518 = vmatprep.subr.bf16.mxu0 0
          %519 = vmatpush1.bf16.msra.mxu0 0
          %520 = vmatprep.subr.bf16.mxu0 0
          %521 = vmatpush1.bf16.msra.mxu0 0
          %522 = vmatprep.subr.bf16.mxu0 0
          %523 = vmatpush1.bf16.msra.mxu0 0
          %524 = vmatprep.subr.bf16.mxu0 0
          %525 = vmatpush1.bf16.msra.mxu0 0
          %526 = vmatprep.subr.bf16.mxu0 0
          %527 = vmatpush1.bf16.msra.mxu0 0
          %528 = vmatprep.subr.bf16.mxu0 0
          %529 = vmatpush1.bf16.msra.mxu0 %v510
          %530 = vmatprep.subr.bf16.mxu0 0
          %531 = vmatpush1.bf16.msra.mxu0 %v509
          %532 = vmatprep.subr.bf16.mxu0 0
          %533 = vmatpush2.bf16.msra.mxu0 0
          %534 = vmatprep.subr.bf16.mxu0 0
          %535 = vmatpush2.bf16.msra.mxu0 0
          %536 = vmatprep.subr.bf16.mxu0 0
          %537 = vmatpush2.bf16.msra.mxu0 0
          %538 = vmatprep.subr.bf16.mxu0 0
          %539 = vmatpush2.bf16.msra.mxu0 0
          %540 = vmatprep.subr.bf16.mxu0 0
          %541 = vmatpush2.bf16.msra.mxu0 0
          %542 = vmatprep.subr.bf16.mxu0 0
          %543 = vmatpush2.bf16.msra.mxu0 0
          %544 = vmatprep.subr.bf16.mxu0 0
          %545 = vmatpush2.bf16.msra.mxu0 0
          %546 = vmatprep.subr.bf16.mxu0 0
          %547 = vmatpush2.bf16.msra.mxu0 0
          %548 = vmatprep.mubr.bf16.mxu0 0
          %549 = vmatmul.mubr.bf16.gmra.mxu0 %v514
          %v550 = vpop.f32.mrf.mxu0
          %v551 = vadd.f32 %v500, %v550
          %v552 = vpop.f32.mrf.mxu0
          %v553 = vpop.f32.mrf.mxu0
          %v554 = vpop.f32.mrf.mxu0
          %555 = vdwg.mxu0
          %556 = vst.msk [vmem:[#allocation2] sm:$0xff] %vm463, %v551
          %v557 = vmax.f32 %v490, 0.0
          %s558 = scalar_lea.vmem [#allocation8], 16
          %v559 = vld [vmem:[%s558] sm:$0xf]
          %v560 = vld [vmem:[%s558 + $0x4] sm:$0xf]
          %v561 = vld [vmem:[%s558 + $0x8] sm:$0xf]
          %v562 = vld [vmem:[%s558 + $0xc] sm:$0xf]
          %v563 = vpack.c.bf16 %v557, %v557
          %v564 = vld [vmem:[#allocation9] sm:$0x1]
          %v565 = vlaneseq
          %v566 = vshrl.u32 %v565, 7
          %v567 = vsub.s32 0, %v566
          %v568 = vrot.slane %v564, %v567
          %v573 = vunpack.c.l.b16 %v559
          %v574 = vunpack.c.l.b16 %v560
          %v575 = vunpack.c.l.b16 %v561
          %v576 = vunpack.c.l.b16 %v562
          %v577 = vpack.c.b16 %v574, %v573
          %v578 = vpack.c.b16 %v576, %v575
          %v582 = vsel %vm463, %v563, 0
          %584 = vmatprep.subr.bf16.mxu0 0
          %585 = vmatpush1.bf16.msra.mxu0 0
          %586 = vmatprep.subr.bf16.mxu0 0
          %587 = vmatpush1.bf16.msra.mxu0 0
          %588 = vmatprep.subr.bf16.mxu0 0
          %589 = vmatpush1.bf16.msra.mxu0 0
          %590 = vmatprep.subr.bf16.mxu0 0
          %591 = vmatpush1.bf16.msra.mxu0 0
          %592 = vmatprep.subr.bf16.mxu0 0
          %593 = vmatpush1.bf16.msra.mxu0 0
          %594 = vmatprep.subr.bf16.mxu0 0
          %595 = vmatpush1.bf16.msra.mxu0 0
          %596 = vmatprep.subr.bf16.mxu0 0
          %597 = vmatpush1.bf16.msra.mxu0 %v578
          %598 = vmatprep.subr.bf16.mxu0 0
          %599 = vmatpush1.bf16.msra.mxu0 %v577
          %600 = vmatprep.subr.bf16.mxu0 0
          %601 = vmatpush2.bf16.msra.mxu0 0
          %602 = vmatprep.subr.bf16.mxu0 0
          %603 = vmatpush2.bf16.msra.mxu0 0
          %604 = vmatprep.subr.bf16.mxu0 0
          %605 = vmatpush2.bf16.msra.mxu0 0
          %606 = vmatprep.subr.bf16.mxu0 0
          %607 = vmatpush2.bf16.msra.mxu0 0
          %608 = vmatprep.subr.bf16.mxu0 0
          %609 = vmatpush2.bf16.msra.mxu0 0
          %610 = vmatprep.subr.bf16.mxu0 0
          %611 = vmatpush2.bf16.msra.mxu0 0
          %612 = vmatprep.subr.bf16.mxu0 0
          %613 = vmatpush2.bf16.msra.mxu0 0
          %614 = vmatprep.subr.bf16.mxu0 0
          %615 = vmatpush2.bf16.msra.mxu0 0
          %616 = vmatprep.mubr.bf16.mxu0 0
          %617 = vmatmul.mubr.bf16.gmra.mxu0 %v582
          %v618 = vpop.f32.mrf.mxu0
          %v619 = vadd.f32 %v568, %v618
          %v620 = vpop.f32.mrf.mxu0
          %v621 = vpop.f32.mrf.mxu0
          %v622 = vpop.f32.mrf.mxu0
          %623 = vdwg.mxu0
          %624 = vst.msk [vmem:[#allocation3] sm:$0xff] %vm463, %v619
        $region88: #{structure_module_forward.2} parent=55 // pred_fallthru
          _
        %v625 = vld [vmem:[#allocation2] sm:$0xff]
        %v626 = vld [vmem:[%s1 + $0x2] sm:$0x1]
        %v627 = vld [vmem:[%s1 + $0x3] sm:$0x1]
        %vm628 = vcmask 261120
        %v629 = vsel %vm628, %v625, 0.0
        %630 = vadd.xlane.f32.xlu0 %v629
        %v631 = vpop.xlane.xlu0 %630
        %v632 = vrcp.pop 32.0
        %v633 = vmul.f32 %v631, %v632
        %v634 = vmul.f32 %v625, %v625
        %v635 = vsel %vm628, %v634, 0.0
        %636 = vadd.xlane.f32.xlu0 %v635
        %v637 = vpop.xlane.xlu0 %636
        %v638 = vmul.f32 %v637, %v632
        %v639 = vmul.f32 %v633, %v633
        %v640 = vsub.f32 %v638, %v639
        %v641 = vmax.f32 %v640, 0.0
        %v642 = vsub.f32 %v625, %v633
        %v643 = vadd.f32 %v641, 1e-05
        %v644 = vrsqrt.pop %v643
        %v645 = vmul.f32 %v642, %v644
        %v646 = vlaneseq
        %v647 = vshrl.u32 %v646, 7
        %v648 = vsub.s32 0, %v647
        %v649 = vrot.slane %v626, %v648
        %v650 = vmul.f32 %v645, %v649
        %v651 = vlaneseq
        %v652 = vshrl.u32 %v651, 7
        %v653 = vsub.s32 0, %v652
        %v654 = vrot.slane %v627, %v653
        %v655 = vadd.f32 %v650, %v654
        %s656 = scalar_lea.vmem [#allocation6], 16
        %v657 = vld [vmem:[%s656] sm:$0xf]
        %v658 = vld [vmem:[%s656 + $0x4] sm:$0xf]
        %v659 = vld [vmem:[%s656 + $0x8] sm:$0xf]
        %v660 = vld [vmem:[%s656 + $0xc] sm:$0xf]
        %v661 = vpack.c.bf16 %v655, %v655
        %v662 = vld [vmem:[%s1 + $0x7] sm:$0x1]
        %v663 = vlaneseq
        %v664 = vshrl.u32 %v663, 7
        %v665 = vsub.s32 0, %v664
        %v666 = vrot.slane %v662, %v665
        %v671 = vunpack.c.l.b16 %v657
        %v672 = vunpack.c.l.b16 %v658
        %v673 = vunpack.c.l.b16 %v659
        %v674 = vunpack.c.l.b16 %v660
        %v675 = vpack.c.b16 %v672, %v671
        %v676 = vpack.c.b16 %v674, %v673
        %v680 = vsel %vm628, %v661, 0
        %682 = vmatprep.subr.bf16.mxu0 0
        %683 = vmatpush1.bf16.msra.mxu0 0
        %684 = vmatprep.subr.bf16.mxu0 0
        %685 = vmatpush1.bf16.msra.mxu0 0
        %686 = vmatprep.subr.bf16.mxu0 0
        %687 = vmatpush1.bf16.msra.mxu0 0
        %688 = vmatprep.subr.bf16.mxu0 0
        %689 = vmatpush1.bf16.msra.mxu0 0
        %690 = vmatprep.subr.bf16.mxu0 0
        %691 = vmatpush1.bf16.msra.mxu0 0
        %692 = vmatprep.subr.bf16.mxu0 0
        %693 = vmatpush1.bf16.msra.mxu0 0
        %694 = vmatprep.subr.bf16.mxu0 0
        %695 = vmatpush1.bf16.msra.mxu0 %v676
        %696 = vmatprep.subr.bf16.mxu0 0
        %697 = vmatpush1.bf16.msra.mxu0 %v675
        %698 = vmatprep.subr.bf16.mxu0 0
        %699 = vmatpush2.bf16.msra.mxu0 0
        %700 = vmatprep.subr.bf16.mxu0 0
        %701 = vmatpush2.bf16.msra.mxu0 0
        %702 = vmatprep.subr.bf16.mxu0 0
        %703 = vmatpush2.bf16.msra.mxu0 0
        %704 = vmatprep.subr.bf16.mxu0 0
        %705 = vmatpush2.bf16.msra.mxu0 0
        %706 = vmatprep.subr.bf16.mxu0 0
        %707 = vmatpush2.bf16.msra.mxu0 0
        %708 = vmatprep.subr.bf16.mxu0 0
        %709 = vmatpush2.bf16.msra.mxu0 0
        %710 = vmatprep.subr.bf16.mxu0 0
        %711 = vmatpush2.bf16.msra.mxu0 0
        %712 = vmatprep.subr.bf16.mxu0 0
        %713 = vmatpush2.bf16.msra.mxu0 0
        %714 = vmatprep.mubr.bf16.mxu0 0
        %715 = vmatmul.mubr.bf16.gmra.mxu0 %v680
        %v716 = vpop.f32.mrf.mxu0
        %v717 = vadd.f32 %v666, %v716
        %v718 = vpop.f32.mrf.mxu0
        %v719 = vpop.f32.mrf.mxu0
        %v720 = vpop.f32.mrf.mxu0
        %721 = vdwg.mxu0
        %v722 = vmax.f32 %v717, 0.0
        %s723 = scalar_lea.vmem [#allocation6], 32
        %v724 = vld [vmem:[%s723] sm:$0xf]
        %v725 = vld [vmem:[%s723 + $0x4] sm:$0xf]
        %v726 = vld [vmem:[%s723 + $0x8] sm:$0xf]
        %v727 = vld [vmem:[%s723 + $0xc] sm:$0xf]
        %v728 = vpack.c.bf16 %v722, %v722
        %v729 = vld [vmem:[%s1 + $0x8] sm:$0x1]
        %v730 = vlaneseq
        %v731 = vshrl.u32 %v730, 7
        %v732 = vsub.s32 0, %v731
        %v733 = vrot.slane %v729, %v732
        %v738 = vunpack.c.l.b16 %v724
        %v739 = vunpack.c.l.b16 %v725
        %v740 = vunpack.c.l.b16 %v726
        %v741 = vunpack.c.l.b16 %v727
        %v742 = vpack.c.b16 %v739, %v738
        %v743 = vpack.c.b16 %v741, %v740
        %v747 = vsel %vm628, %v728, 0
        %749 = vmatprep.subr.bf16.mxu0 0
        %750 = vmatpush1.bf16.msra.mxu0 0
        %751 = vmatprep.subr.bf16.mxu0 0
        %752 = vmatpush1.bf16.msra.mxu0 0
        %753 = vmatprep.subr.bf16.mxu0 0
        %754 = vmatpush1.bf16.msra.mxu0 0
        %755 = vmatprep.subr.bf16.mxu0 0
        %756 = vmatpush1.bf16.msra.mxu0 0
        %757 = vmatprep.subr.bf16.mxu0 0
        %758 = vmatpush1.bf16.msra.mxu0 0
        %759 = vmatprep.subr.bf16.mxu0 0
        %760 = vmatpush1.bf16.msra.mxu0 0
        %761 = vmatprep.subr.bf16.mxu0 0
        %762 = vmatpush1.bf16.msra.mxu0 %v743
        %763 = vmatprep.subr.bf16.mxu0 0
        %764 = vmatpush1.bf16.msra.mxu0 %v742
        %765 = vmatprep.subr.bf16.mxu0 0
        %766 = vmatpush2.bf16.msra.mxu0 0
        %767 = vmatprep.subr.bf16.mxu0 0
        %768 = vmatpush2.bf16.msra.mxu0 0
        %769 = vmatprep.subr.bf16.mxu0 0
        %770 = vmatpush2.bf16.msra.mxu0 0
        %771 = vmatprep.subr.bf16.mxu0 0
        %772 = vmatpush2.bf16.msra.mxu0 0
        %773 = vmatprep.subr.bf16.mxu0 0
        %774 = vmatpush2.bf16.msra.mxu0 0
        %775 = vmatprep.subr.bf16.mxu0 0
        %776 = vmatpush2.bf16.msra.mxu0 0
        %777 = vmatprep.subr.bf16.mxu0 0
        %778 = vmatpush2.bf16.msra.mxu0 0
        %779 = vmatprep.subr.bf16.mxu0 0
        %780 = vmatpush2.bf16.msra.mxu0 0
        %781 = vmatprep.mubr.bf16.mxu0 0
        %782 = vmatmul.mubr.bf16.gmra.mxu0 %v747
        %v783 = vpop.f32.mrf.mxu0
        %v784 = vadd.f32 %v733, %v783
        %v785 = vpop.f32.mrf.mxu0
        %v786 = vpop.f32.mrf.mxu0
        %v787 = vpop.f32.mrf.mxu0
        %788 = vdwg.mxu0
        %v789 = vmax.f32 %v784, 0.0
        %s790 = scalar_lea.vmem [#allocation6], 48
        %v791 = vld [vmem:[%s790] sm:$0xf]
        %v792 = vld [vmem:[%s790 + $0x4] sm:$0xf]
        %v793 = vld [vmem:[%s790 + $0x8] sm:$0xf]
        %v794 = vld [vmem:[%s790 + $0xc] sm:$0xf]
        %v795 = vpack.c.bf16 %v789, %v789
        %v800 = vunpack.c.l.b16 %v791
        %v801 = vunpack.c.l.b16 %v792
        %v802 = vunpack.c.l.b16 %v793
        %v803 = vunpack.c.l.b16 %v794
        %v804 = vpack.c.b16 %v801, %v800
        %v805 = vpack.c.b16 %v803, %v802
        %v809 = vsel %vm628, %v795, 0
        %811 = vmatprep.subr.bf16.mxu0 0
        %812 = vmatpush1.bf16.msra.mxu0 0
        %813 = vmatprep.subr.bf16.mxu0 0
        %814 = vmatpush1.bf16.msra.mxu0 0
        %815 = vmatprep.subr.bf16.mxu0 0
        %816 = vmatpush1.bf16.msra.mxu0 0
        %817 = vmatprep.subr.bf16.mxu0 0
        %818 = vmatpush1.bf16.msra.mxu0 0
        %819 = vmatprep.subr.bf16.mxu0 0
        %820 = vmatpush1.bf16.msra.mxu0 0
        %821 = vmatprep.subr.bf16.mxu0 0
        %822 = vmatpush1.bf16.msra.mxu0 0
        %823 = vmatprep.subr.bf16.mxu0 0
        %824 = vmatpush1.bf16.msra.mxu0 %v805
        %825 = vmatprep.subr.bf16.mxu0 0
        %826 = vmatpush1.bf16.msra.mxu0 %v804
        %827 = vmatprep.subr.bf16.mxu0 0
        %828 = vmatpush2.bf16.msra.mxu0 0
        %829 = vmatprep.subr.bf16.mxu0 0
        %830 = vmatpush2.bf16.msra.mxu0 0
        %831 = vmatprep.subr.bf16.mxu0 0
        %832 = vmatpush2.bf16.msra.mxu0 0
        %833 = vmatprep.subr.bf16.mxu0 0
        %834 = vmatpush2.bf16.msra.mxu0 0
        %835 = vmatprep.subr.bf16.mxu0 0
        %836 = vmatpush2.bf16.msra.mxu0 0
        %837 = vmatprep.subr.bf16.mxu0 0
        %838 = vmatpush2.bf16.msra.mxu0 0
        %839 = vmatprep.subr.bf16.mxu0 0
        %840 = vmatpush2.bf16.msra.mxu0 0
        %841 = vmatprep.subr.bf16.mxu0 0
        %842 = vmatpush2.bf16.msra.mxu0 0
        %843 = vmatprep.mubr.bf16.mxu0 0
        %844 = vmatmul.mubr.bf16.gmra.mxu0 %v809
        %v845 = vpop.f32.mrf.mxu0
        %v846 = vadd.f32 0.0, %v845
        %v847 = vpop.f32.mrf.mxu0
        %v848 = vpop.f32.mrf.mxu0
        %v849 = vpop.f32.mrf.mxu0
        %850 = vdwg.mxu0
        %v851 = vadd.f32 %v655, %v846
        %v852 = vld [vmem:[%s1 + $0x9] sm:$0x1]
        %v853 = vlaneseq
        %v854 = vshrl.u32 %v853, 7
        %v855 = vsub.s32 0, %v854
        %v856 = vrot.slane %v852, %v855
        %v857 = vadd.f32 %v851, %v856
        %v858 = vld [vmem:[%s1 + $0x4] sm:$0x1]
        %v859 = vld [vmem:[%s1 + $0x5] sm:$0x1]
        %v860 = vsel %vm628, %v857, 0.0
        %861 = vadd.xlane.f32.xlu0 %v860
        %v862 = vpop.xlane.xlu0 %861
        %v863 = vmul.f32 %v862, %v632
        %v864 = vmul.f32 %v857, %v857
        %v865 = vsel %vm628, %v864, 0.0
        %866 = vadd.xlane.f32.xlu0 %v865
        %v867 = vpop.xlane.xlu0 %866
        %v868 = vmul.f32 %v867, %v632
        %v869 = vmul.f32 %v863, %v863
        %v870 = vsub.f32 %v868, %v869
        %v871 = vmax.f32 %v870, 0.0
        %v872 = vsub.f32 %v857, %v863
        %v873 = vadd.f32 %v871, 1e-05
        %v874 = vrsqrt.pop %v873
        %v875 = vmul.f32 %v872, %v874
        %v876 = vlaneseq
        %v877 = vshrl.u32 %v876, 7
        %v878 = vsub.s32 0, %v877
        %v879 = vrot.slane %v858, %v878
        %v880 = vmul.f32 %v875, %v879
        %v881 = vlaneseq
        %v882 = vshrl.u32 %v881, 7
        %v883 = vsub.s32 0, %v882
        %v884 = vrot.slane %v859, %v883
        %v885 = vadd.f32 %v880, %v884
        %886 = vst.msk [vmem:[#allocation2] sm:$0xff] %vm628, %v885
        %v887 = vmax.f32 %v885, 0.0
        %v888 = vld [vmem:[#allocation8] sm:$0xf]
        %v889 = vld [vmem:[#allocation8 + $0x4] sm:$0xf]
        %v890 = vld [vmem:[#allocation8 + $0x8] sm:$0xf]
        %v891 = vld [vmem:[#allocation8 + $0xc] sm:$0xf]
        %v892 = vpack.c.bf16 %v887, %v887
        %v893 = vld [vmem:[#allocation3] sm:$0xff]
        %v898 = vunpack.c.l.b16 %v888
        %v899 = vunpack.c.l.b16 %v889
        %v900 = vunpack.c.l.b16 %v890
        %v901 = vunpack.c.l.b16 %v891
        %v902 = vpack.c.b16 %v899, %v898
        %v903 = vpack.c.b16 %v901, %v900
        %v907 = vsel %vm628, %v892, 0
        %909 = vmatprep.subr.bf16.mxu0 0
        %910 = vmatpush1.bf16.msra.mxu0 0
        %911 = vmatprep.subr.bf16.mxu0 0
        %912 = vmatpush1.bf16.msra.mxu0 0
        %913 = vmatprep.subr.bf16.mxu0 0
        %914 = vmatpush1.bf16.msra.mxu0 0
        %915 = vmatprep.subr.bf16.mxu0 0
        %916 = vmatpush1.bf16.msra.mxu0 0
        %917 = vmatprep.subr.bf16.mxu0 0
        %918 = vmatpush1.bf16.msra.mxu0 0
        %919 = vmatprep.subr.bf16.mxu0 0
        %920 = vmatpush1.bf16.msra.mxu0 0
        %921 = vmatprep.subr.bf16.mxu0 0
        %922 = vmatpush1.bf16.msra.mxu0 %v903
        %923 = vmatprep.subr.bf16.mxu0 0
        %924 = vmatpush1.bf16.msra.mxu0 %v902
        %925 = vmatprep.subr.bf16.mxu0 0
        %926 = vmatpush2.bf16.msra.mxu0 0
        %927 = vmatprep.subr.bf16.mxu0 0
        %928 = vmatpush2.bf16.msra.mxu0 0
        %929 = vmatprep.subr.bf16.mxu0 0
        %930 = vmatpush2.bf16.msra.mxu0 0
        %931 = vmatprep.subr.bf16.mxu0 0
        %932 = vmatpush2.bf16.msra.mxu0 0
        %933 = vmatprep.subr.bf16.mxu0 0
        %934 = vmatpush2.bf16.msra.mxu0 0
        %935 = vmatprep.subr.bf16.mxu0 0
        %936 = vmatpush2.bf16.msra.mxu0 0
        %937 = vmatprep.subr.bf16.mxu0 0
        %938 = vmatpush2.bf16.msra.mxu0 0
        %939 = vmatprep.subr.bf16.mxu0 0
        %940 = vmatpush2.bf16.msra.mxu0 0
        %941 = vmatprep.mubr.bf16.mxu0 0
        %942 = vmatmul.mubr.bf16.gmra.mxu0 %v907
        %v943 = vpop.f32.mrf.mxu0
        %v944 = vadd.f32 %v893, %v943
        %v945 = vpop.f32.mrf.mxu0
        %v946 = vpop.f32.mrf.mxu0
        %v947 = vpop.f32.mrf.mxu0
        %948 = vdwg.mxu0
        %v949 = vmax.f32 %v944, 0.0
        %v950 = vld [vmem:[#allocation11] sm:$0xf]
        %v951 = vld [vmem:[#allocation11 + $0x4] sm:$0xf]
        %v952 = vld [vmem:[#allocation11 + $0x8] sm:$0xf]
        %v953 = vld [vmem:[#allocation11 + $0xc] sm:$0xf]
        %v954 = vpack.c.bf16 %v949, %v949
        %v955 = vld [vmem:[#allocation9 + $0x1] sm:$0x1]
        %v956 = vlaneseq
        %v957 = vshrl.u32 %v956, 7
        %v958 = vsub.s32 0, %v957
        %v959 = vrot.slane %v955, %v958
        %v964 = vunpack.c.l.b16 %v950
        %v965 = vunpack.c.l.b16 %v951
        %v966 = vunpack.c.l.b16 %v952
        %v967 = vunpack.c.l.b16 %v953
        %v968 = vpack.c.b16 %v965, %v964
        %v969 = vpack.c.b16 %v967, %v966
        %v973 = vsel %vm628, %v954, 0
        %975 = vmatprep.subr.bf16.mxu0 0
        %976 = vmatpush1.bf16.msra.mxu0 0
        %977 = vmatprep.subr.bf16.mxu0 0
        %978 = vmatpush1.bf16.msra.mxu0 0
        %979 = vmatprep.subr.bf16.mxu0 0
        %980 = vmatpush1.bf16.msra.mxu0 0
        %981 = vmatprep.subr.bf16.mxu0 0
        %982 = vmatpush1.bf16.msra.mxu0 0
        %983 = vmatprep.subr.bf16.mxu0 0
        %984 = vmatpush1.bf16.msra.mxu0 0
        %985 = vmatprep.subr.bf16.mxu0 0
        %986 = vmatpush1.bf16.msra.mxu0 0
        %987 = vmatprep.subr.bf16.mxu0 0
        %988 = vmatpush1.bf16.msra.mxu0 %v969
        %989 = vmatprep.subr.bf16.mxu0 0
        %990 = vmatpush1.bf16.msra.mxu0 %v968
        %991 = vmatprep.subr.bf16.mxu0 0
        %992 = vmatpush2.bf16.msra.mxu0 0
        %993 = vmatprep.subr.bf16.mxu0 0
        %994 = vmatpush2.bf16.msra.mxu0 0
        %995 = vmatprep.subr.bf16.mxu0 0
        %996 = vmatpush2.bf16.msra.mxu0 0
        %997 = vmatprep.subr.bf16.mxu0 0
        %998 = vmatpush2.bf16.msra.mxu0 0
        %999 = vmatprep.subr.bf16.mxu0 0
        %1000 = vmatpush2.bf16.msra.mxu0 0
        %1001 = vmatprep.subr.bf16.mxu0 0
        %1002 = vmatpush2.bf16.msra.mxu0 0
        %1003 = vmatprep.subr.bf16.mxu0 0
        %1004 = vmatpush2.bf16.msra.mxu0 0
        %1005 = vmatprep.subr.bf16.mxu0 0
        %1006 = vmatpush2.bf16.msra.mxu0 0
        %1007 = vmatprep.mubr.bf16.mxu0 0
        %1008 = vmatmul.mubr.bf16.gmra.mxu0 %v973
        %v1009 = vpop.f32.mrf.mxu0
        %v1010 = vadd.f32 %v959, %v1009
        %v1011 = vpop.f32.mrf.mxu0
        %v1012 = vpop.f32.mrf.mxu0
        %v1013 = vpop.f32.mrf.mxu0
        %1014 = vdwg.mxu0
        %v1015 = vmax.f32 %v1010, 0.0
        %s1016 = scalar_lea.vmem [#allocation11], 16
        %v1017 = vld [vmem:[%s1016] sm:$0xf]
        %v1018 = vld [vmem:[%s1016 + $0x4] sm:$0xf]
        %v1019 = vld [vmem:[%s1016 + $0x8] sm:$0xf]
        %v1020 = vld [vmem:[%s1016 + $0xc] sm:$0xf]
        %v1021 = vpack.c.bf16 %v1015, %v1015
        %v1026 = vunpack.c.l.b16 %v1017
        %v1027 = vunpack.c.l.b16 %v1018
        %v1028 = vunpack.c.l.b16 %v1019
        %v1029 = vunpack.c.l.b16 %v1020
        %v1030 = vpack.c.b16 %v1027, %v1026
        %v1031 = vpack.c.b16 %v1029, %v1028
        %v1035 = vsel %vm628, %v1021, 0
        %1037 = vmatprep.subr.bf16.mxu0 0
        %1038 = vmatpush1.bf16.msra.mxu0 0
        %1039 = vmatprep.subr.bf16.mxu0 0
        %1040 = vmatpush1.bf16.msra.mxu0 0
        %1041 = vmatprep.subr.bf16.mxu0 0
        %1042 = vmatpush1.bf16.msra.mxu0 0
        %1043 = vmatprep.subr.bf16.mxu0 0
        %1044 = vmatpush1.bf16.msra.mxu0 0
        %1045 = vmatprep.subr.bf16.mxu0 0
        %1046 = vmatpush1.bf16.msra.mxu0 0
        %1047 = vmatprep.subr.bf16.mxu0 0
        %1048 = vmatpush1.bf16.msra.mxu0 0
        %1049 = vmatprep.subr.bf16.mxu0 0
        %1050 = vmatpush1.bf16.msra.mxu0 %v1031
        %1051 = vmatprep.subr.bf16.mxu0 0
        %1052 = vmatpush1.bf16.msra.mxu0 %v1030
        %1053 = vmatprep.subr.bf16.mxu0 0
        %1054 = vmatpush2.bf16.msra.mxu0 0
        %1055 = vmatprep.subr.bf16.mxu0 0
        %1056 = vmatpush2.bf16.msra.mxu0 0
        %1057 = vmatprep.subr.bf16.mxu0 0
        %1058 = vmatpush2.bf16.msra.mxu0 0
        %1059 = vmatprep.subr.bf16.mxu0 0
        %1060 = vmatpush2.bf16.msra.mxu0 0
        %1061 = vmatprep.subr.bf16.mxu0 0
        %1062 = vmatpush2.bf16.msra.mxu0 0
        %1063 = vmatprep.subr.bf16.mxu0 0
        %1064 = vmatpush2.bf16.msra.mxu0 0
        %1065 = vmatprep.subr.bf16.mxu0 0
        %1066 = vmatpush2.bf16.msra.mxu0 0
        %1067 = vmatprep.subr.bf16.mxu0 0
        %1068 = vmatpush2.bf16.msra.mxu0 0
        %1069 = vmatprep.mubr.bf16.mxu0 0
        %1070 = vmatmul.mubr.bf16.gmra.mxu0 %v1035
        %v1071 = vpop.f32.mrf.mxu0
        %v1072 = vadd.f32 0.0, %v1071
        %v1073 = vpop.f32.mrf.mxu0
        %v1074 = vpop.f32.mrf.mxu0
        %v1075 = vpop.f32.mrf.mxu0
        %1076 = vdwg.mxu0
        %v1077 = vadd.f32 %v944, %v1072
        %v1078 = vld [vmem:[#allocation9 + $0x2] sm:$0x1]
        %v1079 = vlaneseq
        %v1080 = vshrl.u32 %v1079, 7
        %v1081 = vsub.s32 0, %v1080
        %v1082 = vrot.slane %v1078, %v1081
        %v1083 = vadd.f32 %v1077, %v1082
        %v1084 = vmax.f32 %v1083, 0.0
        %s1085 = scalar_lea.vmem [#allocation11], 32
        %v1086 = vld [vmem:[%s1085] sm:$0xf]
        %v1087 = vld [vmem:[%s1085 + $0x4] sm:$0xf]
        %v1088 = vld [vmem:[%s1085 + $0x8] sm:$0xf]
        %v1089 = vld [vmem:[%s1085 + $0xc] sm:$0xf]
        %v1090 = vpack.c.bf16 %v1084, %v1084
        %v1091 = vld [vmem:[#allocation9 + $0x3] sm:$0x1]
        %v1092 = vlaneseq
        %v1093 = vshrl.u32 %v1092, 7
        %v1094 = vsub.s32 0, %v1093
        %v1095 = vrot.slane %v1091, %v1094
        %v1100 = vunpack.c.l.b16 %v1086
        %v1101 = vunpack.c.l.b16 %v1087
        %v1102 = vunpack.c.l.b16 %v1088
        %v1103 = vunpack.c.l.b16 %v1089
        %v1104 = vpack.c.b16 %v1101, %v1100
        %v1105 = vpack.c.b16 %v1103, %v1102
        %v1109 = vsel %vm628, %v1090, 0
        %1111 = vmatprep.subr.bf16.mxu0 0
        %1112 = vmatpush1.bf16.msra.mxu0 0
        %1113 = vmatprep.subr.bf16.mxu0 0
        %1114 = vmatpush1.bf16.msra.mxu0 0
        %1115 = vmatprep.subr.bf16.mxu0 0
        %1116 = vmatpush1.bf16.msra.mxu0 0
        %1117 = vmatprep.subr.bf16.mxu0 0
        %1118 = vmatpush1.bf16.msra.mxu0 0
        %1119 = vmatprep.subr.bf16.mxu0 0
        %1120 = vmatpush1.bf16.msra.mxu0 0
        %1121 = vmatprep.subr.bf16.mxu0 0
        %1122 = vmatpush1.bf16.msra.mxu0 0
        %1123 = vmatprep.subr.bf16.mxu0 0
        %1124 = vmatpush1.bf16.msra.mxu0 %v1105
        %1125 = vmatprep.subr.bf16.mxu0 0
        %1126 = vmatpush1.bf16.msra.mxu0 %v1104
        %1127 = vmatprep.subr.bf16.mxu0 0
        %1128 = vmatpush2.bf16.msra.mxu0 0
        %1129 = vmatprep.subr.bf16.mxu0 0
        %1130 = vmatpush2.bf16.msra.mxu0 0
        %1131 = vmatprep.subr.bf16.mxu0 0
        %1132 = vmatpush2.bf16.msra.mxu0 0
        %1133 = vmatprep.subr.bf16.mxu0 0
        %1134 = vmatpush2.bf16.msra.mxu0 0
        %1135 = vmatprep.subr.bf16.mxu0 0
        %1136 = vmatpush2.bf16.msra.mxu0 0
        %1137 = vmatprep.subr.bf16.mxu0 0
        %1138 = vmatpush2.bf16.msra.mxu0 0
        %1139 = vmatprep.subr.bf16.mxu0 0
        %1140 = vmatpush2.bf16.msra.mxu0 0
        %1141 = vmatprep.subr.bf16.mxu0 0
        %1142 = vmatpush2.bf16.msra.mxu0 0
        %1143 = vmatprep.mubr.bf16.mxu0 0
        %1144 = vmatmul.mubr.bf16.gmra.mxu0 %v1109
        %v1145 = vpop.f32.mrf.mxu0
        %v1146 = vadd.f32 %v1095, %v1145
        %v1147 = vpop.f32.mrf.mxu0
        %v1148 = vpop.f32.mrf.mxu0
        %v1149 = vpop.f32.mrf.mxu0
        %1150 = vdwg.mxu0
        %v1151 = vmax.f32 %v1146, 0.0
        %s1152 = scalar_lea.vmem [#allocation11], 48
        %v1153 = vld [vmem:[%s1152] sm:$0xf]
        %v1154 = vld [vmem:[%s1152 + $0x4] sm:$0xf]
        %v1155 = vld [vmem:[%s1152 + $0x8] sm:$0xf]
        %v1156 = vld [vmem:[%s1152 + $0xc] sm:$0xf]
        %v1157 = vpack.c.bf16 %v1151, %v1151
        %v1162 = vunpack.c.l.b16 %v1153
        %v1163 = vunpack.c.l.b16 %v1154
        %v1164 = vunpack.c.l.b16 %v1155
        %v1165 = vunpack.c.l.b16 %v1156
        %v1166 = vpack.c.b16 %v1163, %v1162
        %v1167 = vpack.c.b16 %v1165, %v1164
        %v1171 = vsel %vm628, %v1157, 0
        %1173 = vmatprep.subr.bf16.mxu0 0
        %1174 = vmatpush1.bf16.msra.mxu0 0
        %1175 = vmatprep.subr.bf16.mxu0 0
        %1176 = vmatpush1.bf16.msra.mxu0 0
        %1177 = vmatprep.subr.bf16.mxu0 0
        %1178 = vmatpush1.bf16.msra.mxu0 0
        %1179 = vmatprep.subr.bf16.mxu0 0
        %1180 = vmatpush1.bf16.msra.mxu0 0
        %1181 = vmatprep.subr.bf16.mxu0 0
        %1182 = vmatpush1.bf16.msra.mxu0 0
        %1183 = vmatprep.subr.bf16.mxu0 0
        %1184 = vmatpush1.bf16.msra.mxu0 0
        %1185 = vmatprep.subr.bf16.mxu0 0
        %1186 = vmatpush1.bf16.msra.mxu0 %v1167
        %1187 = vmatprep.subr.bf16.mxu0 0
        %1188 = vmatpush1.bf16.msra.mxu0 %v1166
        %1189 = vmatprep.subr.bf16.mxu0 0
        %1190 = vmatpush2.bf16.msra.mxu0 0
        %1191 = vmatprep.subr.bf16.mxu0 0
        %1192 = vmatpush2.bf16.msra.mxu0 0
        %1193 = vmatprep.subr.bf16.mxu0 0
        %1194 = vmatpush2.bf16.msra.mxu0 0
        %1195 = vmatprep.subr.bf16.mxu0 0
        %1196 = vmatpush2.bf16.msra.mxu0 0
        %1197 = vmatprep.subr.bf16.mxu0 0
        %1198 = vmatpush2.bf16.msra.mxu0 0
        %1199 = vmatprep.subr.bf16.mxu0 0
        %1200 = vmatpush2.bf16.msra.mxu0 0
        %1201 = vmatprep.subr.bf16.mxu0 0
        %1202 = vmatpush2.bf16.msra.mxu0 0
        %1203 = vmatprep.subr.bf16.mxu0 0
        %1204 = vmatpush2.bf16.msra.mxu0 0
        %1205 = vmatprep.mubr.bf16.mxu0 0
        %1206 = vmatmul.mubr.bf16.gmra.mxu0 %v1171
        %v1207 = vpop.f32.mrf.mxu0
        %v1208 = vadd.f32 0.0, %v1207
        %v1209 = vpop.f32.mrf.mxu0
        %v1210 = vpop.f32.mrf.mxu0
        %v1211 = vpop.f32.mrf.mxu0
        %1212 = vdwg.mxu0
        %v1213 = vadd.f32 %v1083, %v1208
        %v1214 = vld [vmem:[#allocation9 + $0x4] sm:$0x1]
        %v1215 = vlaneseq
        %v1216 = vshrl.u32 %v1215, 7
        %v1217 = vsub.s32 0, %v1216
        %v1218 = vrot.slane %v1214, %v1217
        %v1219 = vadd.f32 %v1213, %v1218
        %v1220 = vld [vmem:[#allocation12] sm:$0xf]
        %v1221 = vld [vmem:[#allocation12 + $0x4] sm:$0xf]
        %v1222 = vld [vmem:[#allocation12 + $0x8] sm:$0xf]
        %v1223 = vld [vmem:[#allocation12 + $0xc] sm:$0xf]
        %v1224 = vpack.c.bf16 %v885, %v885
        %v1225 = vmax.f32 %v1219, 0.0
        %v1226 = vld [vmem:[#allocation14] sm:$0xf]
        %v1227 = vld [vmem:[#allocation14 + $0x4] sm:$0xf]
        %v1228 = vld [vmem:[#allocation14 + $0x8] sm:$0xf]
        %v1229 = vld [vmem:[#allocation14 + $0xc] sm:$0xf]
        %v1230 = vpack.c.bf16 %v1225, %v1225
        %v1235 = vunpack.c.l.b16 %v1226
        %v1236 = vunpack.c.l.b16 %v1227
        %v1237 = vunpack.c.l.b16 %v1228
        %v1238 = vunpack.c.l.b16 %v1229
        %v1239 = vpack.c.b16 %v1236, %v1235
        %v1240 = vpack.c.b16 %v1238, %v1237
        %v1244 = vsel %vm628, %v1230, 0
        %1246 = vmatprep.subr.bf16.mxu0 0
        %1247 = vmatpush1.bf16.msra.mxu0 0
        %1248 = vmatprep.subr.bf16.mxu0 0
        %1249 = vmatpush1.bf16.msra.mxu0 0
        %1250 = vmatprep.subr.bf16.mxu0 0
        %1251 = vmatpush1.bf16.msra.mxu0 0
        %1252 = vmatprep.subr.bf16.mxu0 0
        %1253 = vmatpush1.bf16.msra.mxu0 0
        %1254 = vmatprep.subr.bf16.mxu0 0
        %1255 = vmatpush1.bf16.msra.mxu0 0
        %1256 = vmatprep.subr.bf16.mxu0 0
        %1257 = vmatpush1.bf16.msra.mxu0 0
        %1258 = vmatprep.subr.bf16.mxu0 0
        %1259 = vmatpush1.bf16.msra.mxu0 %v1240
        %1260 = vmatprep.subr.bf16.mxu0 0
        %1261 = vmatpush1.bf16.msra.mxu0 %v1239
        %1262 = vmatprep.subr.bf16.mxu0 0
        %1263 = vmatpush2.bf16.msra.mxu0 0
        %1264 = vmatprep.subr.bf16.mxu0 0
        %1265 = vmatpush2.bf16.msra.mxu0 0
        %1266 = vmatprep.subr.bf16.mxu0 0
        %1267 = vmatpush2.bf16.msra.mxu0 0
        %1268 = vmatprep.subr.bf16.mxu0 0
        %1269 = vmatpush2.bf16.msra.mxu0 0
        %1270 = vmatprep.subr.bf16.mxu0 0
        %1271 = vmatpush2.bf16.msra.mxu0 0
        %1272 = vmatprep.subr.bf16.mxu0 0
        %1273 = vmatpush2.bf16.msra.mxu0 0
        %1274 = vmatprep.subr.bf16.mxu0 0
        %1275 = vmatpush2.bf16.msra.mxu0 0
        %1276 = vmatprep.subr.bf16.mxu0 0
        %1277 = vmatpush2.bf16.msra.mxu0 0
        %1278 = vmatprep.mubr.bf16.mxu0 0
        %1279 = vmatmul.mubr.bf16.gmra.mxu0 %v1244
        %v1280 = vpop.f32.mrf.mxu0
        %v1281 = vadd.f32 0.0, %v1280
        %v1282 = vpop.f32.mrf.mxu0
        %v1283 = vpop.f32.mrf.mxu0
        %v1284 = vpop.f32.mrf.mxu0
        %1285 = vdwg.mxu0
        %v1290 = vunpack.c.l.b16 %v1220
        %v1291 = vunpack.c.l.b16 %v1221
        %v1292 = vunpack.c.l.b16 %v1222
        %v1293 = vunpack.c.l.b16 %v1223
        %v1294 = vpack.c.b16 %v1291, %v1290
        %v1295 = vpack.c.b16 %v1293, %v1292
        %v1299 = vsel %vm628, %v1224, 0
        %1301 = vmatprep.subr.bf16.mxu0 0
        %1302 = vmatpush1.bf16.msra.mxu0 0
        %1303 = vmatprep.subr.bf16.mxu0 0
        %1304 = vmatpush1.bf16.msra.mxu0 0
        %1305 = vmatprep.subr.bf16.mxu0 0
        %1306 = vmatpush1.bf16.msra.mxu0 0
        %1307 = vmatprep.subr.bf16.mxu0 0
        %1308 = vmatpush1.bf16.msra.mxu0 0
        %1309 = vmatprep.subr.bf16.mxu0 0
        %1310 = vmatpush1.bf16.msra.mxu0 0
        %1311 = vmatprep.subr.bf16.mxu0 0
        %1312 = vmatpush1.bf16.msra.mxu0 0
        %1313 = vmatprep.subr.bf16.mxu0 0
        %1314 = vmatpush1.bf16.msra.mxu0 %v1295
        %1315 = vmatprep.subr.bf16.mxu0 0
        %1316 = vmatpush1.bf16.msra.mxu0 %v1294
        %1317 = vmatprep.subr.bf16.mxu0 0
        %1318 = vmatpush2.bf16.msra.mxu0 0
        %1319 = vmatprep.subr.bf16.mxu0 0
        %1320 = vmatpush2.bf16.msra.mxu0 0
        %1321 = vmatprep.subr.bf16.mxu0 0
        %1322 = vmatpush2.bf16.msra.mxu0 0
        %1323 = vmatprep.subr.bf16.mxu0 0
        %1324 = vmatpush2.bf16.msra.mxu0 0
        %1325 = vmatprep.subr.bf16.mxu0 0
        %1326 = vmatpush2.bf16.msra.mxu0 0
        %1327 = vmatprep.subr.bf16.mxu0 0
        %1328 = vmatpush2.bf16.msra.mxu0 0
        %1329 = vmatprep.subr.bf16.mxu0 0
        %1330 = vmatpush2.bf16.msra.mxu0 0
        %1331 = vmatprep.subr.bf16.mxu0 0
        %1332 = vmatpush2.bf16.msra.mxu0 0
        %1333 = vmatprep.mubr.bf16.mxu0 0
        %1334 = vmatmul.mubr.bf16.gmra.mxu0 %v1299
        %v1335 = vpop.f32.mrf.mxu0
        %v1336 = vadd.f32 %v1281, %v1335
        %v1337 = vpop.f32.mrf.mxu0
        %v1338 = vpop.f32.mrf.mxu0
        %v1339 = vpop.f32.mrf.mxu0
        %1340 = vdwg.mxu0
        %v1341 = vld [vmem:[%s8] sm:$0x1]
        %v1343 = vlaneseq
        %v1344 = vshrl.u32 %v1343, 7
        %v1345 = vsub.s32 0, %v1344
        %v1346 = vrot.slane %v1341, %v1345
        %v1348 = vadd.f32 %v1336, %v1346
        %1349 = vst [vmem:[%s454] sm:$0xff] %v1348
        %p1350 = scmp.lt.s32.totalorder %s31, 1
        %s1351 = scalar_select %p1350, %s31, 1
        %p1352 = scmp.lt.s32.totalorder %s30, 1
        %s1353 = scalar_select %p1352, %s30, 1
        %s1354 = smul.addr %s1351, 2
        %s1355 = sadd.s32 %s1353, %s1354
        %s1356 = smul.addr %s1355, 8
        %s1357 = scalar_lea.vmem %s9, %s1356
        // Predicated region
        $region89: #{structure_module_forward.2} parent=55 // pred_check
          %p1358 = pneg %p252
        $region90: #{structure_module_forward.2} parent=55 // pred_check_branch
          %1360 = sbr.rel (%p1358) target = $region92
        $region91: #{structure_module_forward.2} parent=55 // pred_region
          _
        $region92: #{structure_module_forward.2} parent=55 // pred_fallthru
          _
      $region56: #{structure_module_forward.2} parent=5 // pred_fallthru
        _
      %p1361 = scmp.le.s32.totalorder 2, %s21
      // Predicated region
      $region93: #{structure_module_forward.2} parent=5 // pred_check
        %p1362 = pneg %p1361
      $region94: #{structure_module_forward.2} parent=5 // pred_check_branch
        %1364 = sbr.rel (%p1362) target = $region96
      $region95: #{structure_module_forward.2} parent=5 // pred_region
        %s1365 = ssub.s32 %s21, 2
        // Predicated region
        $region97: #{structure_module_forward.2} parent=95 // pred_check
          %p1366 = pneg %p258
        $region98: #{structure_module_forward.2} parent=95 // pred_check_branch
          %1368 = sbr.rel (%p1366) target = $region100
        $region99: #{structure_module_forward.2} parent=95 // pred_region
          %p1369 = scmp.lt.s32.totalorder %s33, 1
          %s1370 = scalar_select %p1369, %s33, 1
          %p1371 = scmp.lt.s32.totalorder %s32, 1
          %s1372 = scalar_select %p1371, %s32, 1
          %s1373 = smul.addr %s1370, 2
          %s1374 = sadd.s32 %s1372, %s1373
          %s1375 = smul.addr %s1374, 8
          %s1376 = scalar_lea.vmem %s9, %s1375
        $region100: #{structure_module_forward.2} parent=95 // pred_fallthru
          _
      $region96: #{structure_module_forward.2} parent=5 // pred_fallthru
        _
    $region6: #{structure_module_forward.2} parent=1 // loop_footer
      %s25 = sadd.s32 1, %s21
    $region7: #{structure_module_forward.2} parent=1 // loop_footer_branch
      %20 = sbr.rel target = $region3
    $region8: #{structure_module_forward.2} parent=1 // loop_exit
      _
    %1377 = vsyncpa [#allocation5], 1
    %s1378 = scalar_lea.sflag [#allocation5], 1
    %1379 = vsyncpa %s1378, 1
    %1380 = vsyncpa [#allocation7], 1
    %1381 = vsyncpa [#allocation10], 1
    %1382 = vsyncpa [#allocation13], 1

// kernel: structure_module_forward.3
$region0: #{structure_module_forward.3}
  #allocation0 [shape = 'u32[]', space=smem, size = 0x4, offset = 0x4, fixed_abs, tag = 'smem constant byte address 0x4 - core index']
  #allocation1 [shape = 'u32[144,128]{1,0:T(1,128)}', space=vmem, size = 0x12000, scoped, tag = 'internal scratch']
  %s0 = inlined_call_operand.vmem [shape: f32[32,128], index: 0, kind: input, shape index: {}]
  %s1 = inlined_call_operand.vmem [shape: f32[1,128], index: 1, kind: input, shape index: {}]
  %s2 = inlined_call_operand.vmem [shape: f32[1,128], index: 2, kind: input, shape index: {}]
  %s3 = inlined_call_operand.vmem [shape: f32[128,128], index: 3, kind: input, shape index: {}]
  %s4 = inlined_call_operand.vmem [shape: f32[32,128], index: 4, kind: output, shape index: {}]
  %s5 = sld [smem:[#allocation0]]
  $region49: #{structure_module_forward.3} parent=0
    _
  %s7 = ssub.s32 1, %s5
  %s8 = scalar_select 0, %s7, %s5
  loop: start=0, step=1, limit=4
  $region2: #{structure_module_forward.3} parent=0 // loop_pre_header
    _
  $region3: #{structure_module_forward.3} parent=0 // loop_header
    %s10 = sphi 0, %s14
    %p11 = scmp.ge.s32.totalorder %s10, 4
    %s20 = sphi 0, %s22
    %s23 = sphi 0, %s20
    %s24 = sphi 0, %s23
    %s40 = sphi 0, %s24
    %s44 = sphi 0, %s44
    %s46 = sphi 0, %s44
    %s47 = sphi 0, %s46
    %s61 = sphi 0, %s47
    %s65 = sphi 0, %s65
    %s67 = sphi 0, %s65
    %s68 = sphi 0, %s67
    %s82 = sphi 0, %s68
    %s86 = sphi 0, %s86
    %s88 = sphi 0, %s86
    %s89 = sphi 0, %s88
    %s103 = sphi 0, %s89
    %s109 = sphi 0, %s111
    %s112 = sphi 0, %s109
    %s113 = sphi 0, %s112
    %s129 = sphi 0, %s113
  $region4: #{structure_module_forward.3} parent=0 // loop_header_branch
    %13 = sbr.rel (%p11) target = $region8
  $region5: #{structure_module_forward.3} parent=0 // loop_body
    %s15 = ssub.s32 %s10, 1
    %s16 = ssub.s32 %s10, 2
    %s17 = sadd.s32 %s10, 1
    %s18 = ssub.s32 %s10, %s17
    %p19 = scmp.eq.s32.totalorder %s18, 0
    %s21 = sadd.s32 %s20, 1
    %s22 = scalar_select %p19, %s20, %s21
    %p25 = pneg %p19
    %p26 = scmp.eq.s32.totalorder %s10, 1
    %p27 = por %p25, %p26
    %p28 = scmp.ne.s32.totalorder %s20, %s23
    %p29 = scmp.eq.s32.totalorder %s10, 0
    %p30 = por %p28, %p29
    %p31 = scmp.ne.s32.totalorder %s20, %s23
    %p32 = scmp.eq.s32.totalorder %s15, 1
    %p33 = por %p31, %p32
    %p34 = scmp.ne.s32.totalorder %s23, %s24
    %p35 = scmp.eq.s32.totalorder %s15, 0
    %p36 = por %p34, %p35
    %p37 = scmp.ne.s32.totalorder %s23, %s24
    %p38 = scmp.eq.s32.totalorder %s16, 1
    %p39 = por %p37, %p38
    %p41 = scmp.ne.s32.totalorder %s24, %s40
    %p42 = scmp.eq.s32.totalorder %s16, 0
    %p43 = por %p41, %p42
    %s45 = sadd.s32 %s44, 1
    %p48 = scmp.eq.s32.totalorder %s10, 1
    %p49 = scmp.ne.s32.totalorder %s44, %s46
    %p50 = scmp.eq.s32.totalorder %s10, 0
    %p51 = por %p49, %p50
    %p52 = scmp.ne.s32.totalorder %s44, %s46
    %p53 = scmp.eq.s32.totalorder %s15, 1
    %p54 = por %p52, %p53
    %p55 = scmp.ne.s32.totalorder %s46, %s47
    %p56 = scmp.eq.s32.totalorder %s15, 0
    %p57 = por %p55, %p56
    %p58 = scmp.ne.s32.totalorder %s46, %s47
    %p59 = scmp.eq.s32.totalorder %s16, 1
    %p60 = por %p58, %p59
    %p62 = scmp.ne.s32.totalorder %s47, %s61
    %p63 = scmp.eq.s32.totalorder %s16, 0
    %p64 = por %p62, %p63
    %s66 = sadd.s32 %s65, 1
    %p69 = scmp.eq.s32.totalorder %s10, 1
    %p70 = scmp.ne.s32.totalorder %s65, %s67
    %p71 = scmp.eq.s32.totalorder %s10, 0
    %p72 = por %p70, %p71
    %p73 = scmp.ne.s32.totalorder %s65, %s67
    %p74 = scmp.eq.s32.totalorder %s15, 1
    %p75 = por %p73, %p74
    %p76 = scmp.ne.s32.totalorder %s67, %s68
    %p77 = scmp.eq.s32.totalorder %s15, 0
    %p78 = por %p76, %p77
    %p79 = scmp.ne.s32.totalorder %s67, %s68
    %p80 = scmp.eq.s32.totalorder %s16, 1
    %p81 = por %p79, %p80
    %p83 = scmp.ne.s32.totalorder %s68, %s82
    %p84 = scmp.eq.s32.totalorder %s16, 0
    %p85 = por %p83, %p84
    %s87 = sadd.s32 %s86, 1
    %p90 = scmp.eq.s32.totalorder %s10, 1
    %p91 = scmp.ne.s32.totalorder %s86, %s88
    %p92 = scmp.eq.s32.totalorder %s10, 0
    %p93 = por %p91, %p92
    %p94 = scmp.ne.s32.totalorder %s86, %s88
    %p95 = scmp.eq.s32.totalorder %s15, 1
    %p96 = por %p94, %p95
    %p97 = scmp.ne.s32.totalorder %s88, %s89
    %p98 = scmp.eq.s32.totalorder %s15, 0
    %p99 = por %p97, %p98
    %p100 = scmp.ne.s32.totalorder %s88, %s89
    %p101 = scmp.eq.s32.totalorder %s16, 1
    %p102 = por %p100, %p101
    %p104 = scmp.ne.s32.totalorder %s89, %s103
    %p105 = scmp.eq.s32.totalorder %s16, 0
    %p106 = por %p104, %p105
    %s107 = ssub.s32 %s10, %s17
    %p108 = scmp.eq.s32.totalorder %s107, 0
    %s110 = sadd.s32 %s109, 1
    %s111 = scalar_select %p108, %s109, %s110
    %p114 = pneg %p108
    %p115 = scmp.eq.s32.totalorder %s10, 1
    %p116 = por %p114, %p115
    %p117 = scmp.ne.s32.totalorder %s109, %s112
    %p118 = scmp.eq.s32.totalorder %s10, 0
    %p119 = por %p117, %p118
    %p120 = scmp.ne.s32.totalorder %s109, %s112
    %p121 = scmp.eq.s32.totalorder %s15, 1
    %p122 = por %p120, %p121
    %p123 = scmp.ne.s32.totalorder %s112, %s113
    %p124 = scmp.eq.s32.totalorder %s15, 0
    %p125 = por %p123, %p124
    %p126 = scmp.ne.s32.totalorder %s112, %s113
    %p127 = scmp.eq.s32.totalorder %s16, 1
    %p128 = por %p126, %p127
    %p130 = scmp.ne.s32.totalorder %s113, %s129
    %p131 = scmp.eq.s32.totalorder %s16, 0
    %p132 = por %p130, %p131
    %p133 = scmp.le.s32.totalorder 1, %s10
    %p134 = scmp.lt.s32.totalorder %s10, 3
    %p135 = pnand %p133, %p134
    %p136 = pneg %p135
    // Predicated region
    $region9: #{structure_module_forward.3} parent=5 // pred_check
      _
    $region10: #{structure_module_forward.3} parent=5 // pred_check_branch
      %138 = sbr.rel (%p135) target = $region12
    $region11: #{structure_module_forward.3} parent=5 // pred_region
      %s139 = ssub.s32 %s10, 1
      // Predicated region
      $region13: #{structure_module_forward.3} parent=11 // pred_check
        %p140 = pneg %p57
      $region14: #{structure_module_forward.3} parent=11 // pred_check_branch
        %142 = sbr.rel (%p140) target = $region16
      $region15: #{structure_module_forward.3} parent=11 // pred_region
        _
      $region16: #{structure_module_forward.3} parent=11 // pred_fallthru
        _
      // Predicated region
      $region17: #{structure_module_forward.3} parent=11 // pred_check
        %p143 = pneg %p78
      $region18: #{structure_module_forward.3} parent=11 // pred_check_branch
        %145 = sbr.rel (%p143) target = $region20
      $region19: #{structure_module_forward.3} parent=11 // pred_region
        _
      $region20: #{structure_module_forward.3} parent=11 // pred_fallthru
        _
      // Predicated region
      $region21: #{structure_module_forward.3} parent=11 // pred_check
        %p146 = pneg %p99
      $region22: #{structure_module_forward.3} parent=11 // pred_check_branch
        %148 = sbr.rel (%p146) target = $region24
      $region23: #{structure_module_forward.3} parent=11 // pred_region
        _
      $region24: #{structure_module_forward.3} parent=11 // pred_fallthru
        _
    $region12: #{structure_module_forward.3} parent=5 // pred_fallthru
      _
    %p149 = scmp.lt.s32.totalorder %s10, 2
    // Predicated region
    $region25: #{structure_module_forward.3} parent=5 // pred_check
      %p150 = pneg %p149
    $region26: #{structure_module_forward.3} parent=5 // pred_check_branch
      %152 = sbr.rel (%p150) target = $region28
    $region27: #{structure_module_forward.3} parent=5 // pred_region
      // Predicated region
      $region29: #{structure_module_forward.3} parent=27 // pred_check
        %p153 = pneg %p30
      $region30: #{structure_module_forward.3} parent=27 // pred_check_branch
        %155 = sbr.rel (%p153) target = $region32
      $region31: #{structure_module_forward.3} parent=27 // pred_region
        %s156 = smul.u32 2, %s10
        %p157 = scmp.lt.s32.totalorder %s156, 3
        %s158 = scalar_select %p157, %s156, 3
        %s159 = smul.addr %s158, 8
        %s160 = scalar_lea.vmem %s0, %s159
        %s161 = smul.u32 2, %s10
      $region32: #{structure_module_forward.3} parent=27 // pred_fallthru
        _
    $region28: #{structure_module_forward.3} parent=5 // pred_fallthru
      _
    %p162 = scmp.le.s32.totalorder 1, %s10
    %p163 = scmp.lt.s32.totalorder %s10, 3
    %p164 = pnand %p162, %p163
    %p165 = pneg %p164
    // Predicated region
    $region33: #{structure_module_forward.3} parent=5 // pred_check
      _
    $region34: #{structure_module_forward.3} parent=5 // pred_check_branch
      %167 = sbr.rel (%p164) target = $region36
    $region35: #{structure_module_forward.3} parent=5 // pred_region
      %s168 = ssub.s32 %s10, 1
      %s169 = smul.u32 2, %s15
      %p170 = scmp.lt.s32.totalorder %s169, 3
      %s171 = scalar_select %p170, %s169, 3
      %s172 = smul.addr %s171, 8
      %s173 = scalar_lea.vmem %s0, %s172
      %p174 = pneg %p36
      %p175 = pneg %p33
      %p176 = pneg %p57
      %p177 = pneg %p54
      %p178 = pneg %p78
      %p179 = pneg %p75
      %p180 = pneg %p99
      %p181 = pneg %p96
      %p182 = pneg %p125
      %p183 = pneg %p122
      %s184 = smul.u32 2, %s15
      %p185 = scmp.lt.s32.totalorder %s184, 3
      %s186 = scalar_select %p185, %s184, 3
      %s187 = smul.addr %s186, 8
      %s188 = scalar_lea.vmem %s4, %s187
      %s189 = smul.u32 2, %s15
      %p190 = scmp.lt.s32.totalorder %s189, 3
      %s191 = scalar_select %p190, %s189, 3
      %s192 = smul.addr %s191, 8
      %s193 = scalar_lea.vmem %s0, %s192
      %s194 = smul.u32 2, %s15
      %s195 = smul.u32 2, %s15
      %p196 = scmp.lt.s32.totalorder %s195, 3
      %s197 = scalar_select %p196, %s195, 3
      %s198 = smul.addr %s197, 8
      %s199 = scalar_lea.vmem %s4, %s198
      %s200 = smul.u32 2, %s15
      %v201 = vld [vmem:[%s193] sm:$0xff]
      %v202 = vld [vmem:[%s193 + $0x8] sm:$0xff]
      %v203 = vld [vmem:[%s3] sm:$0xff]
      %v204 = vld [vmem:[%s3 + $0x8] sm:$0xff]
      %v205 = vld [vmem:[%s3 + $0x10] sm:$0xff]
      %v206 = vld [vmem:[%s3 + $0x18] sm:$0xff]
      %v207 = vld [vmem:[%s3 + $0x20] sm:$0xff]
      %v208 = vld [vmem:[%s3 + $0x28] sm:$0xff]
      %v209 = vld [vmem:[%s3 + $0x30] sm:$0xff]
      %v210 = vld [vmem:[%s3 + $0x38] sm:$0xff]
      %v211 = vld [vmem:[%s3 + $0x40] sm:$0xff]
      %v212 = vld [vmem:[%s3 + $0x48] sm:$0xff]
      %v213 = vld [vmem:[%s3 + $0x50] sm:$0xff]
      %v214 = vld [vmem:[%s3 + $0x58] sm:$0xff]
      %v215 = vld [vmem:[%s3 + $0x60] sm:$0xff]
      %v216 = vld [vmem:[%s3 + $0x68] sm:$0xff]
      %v217 = vld [vmem:[%s3 + $0x70] sm:$0xff]
      %v218 = vld [vmem:[%s3 + $0x78] sm:$0xff]
      %219 = vmatprep.subr.mxu0 0.0
      %220 = vmatpush1.msra.mxu0 %v218
      %221 = vmatprep.subr.mxu0 0.0
      %222 = vmatpush1.msra.mxu0 %v217
      %223 = vmatprep.subr.mxu0 0.0
      %224 = vmatpush1.msra.mxu0 %v216
      %225 = vmatprep.subr.mxu0 0.0
      %226 = vmatpush1.msra.mxu0 %v215
      %227 = vmatprep.subr.mxu0 0.0
      %228 = vmatpush1.msra.mxu0 %v214
      %229 = vmatprep.subr.mxu0 0.0
      %230 = vmatpush1.msra.mxu0 %v213
      %231 = vmatprep.subr.mxu0 0.0
      %232 = vmatpush1.msra.mxu0 %v212
      %233 = vmatprep.subr.mxu0 0.0
      %234 = vmatpush1.msra.mxu0 %v211
      %235 = vmatprep.subr.mxu0 0.0
      %236 = vmatpush1.msra.mxu0 %v210
      %237 = vmatprep.subr.mxu0 0.0
      %238 = vmatpush1.msra.mxu0 %v209
      %239 = vmatprep.subr.mxu0 0.0
      %240 = vmatpush1.msra.mxu0 %v208
      %241 = vmatprep.subr.mxu0 0.0
      %242 = vmatpush1.msra.mxu0 %v207
      %243 = vmatprep.subr.mxu0 0.0
      %244 = vmatpush1.msra.mxu0 %v206
      %245 = vmatprep.subr.mxu0 0.0
      %246 = vmatpush1.msra.mxu0 %v205
      %247 = vmatprep.subr.mxu0 0.0
      %248 = vmatpush1.msra.mxu0 %v204
      %249 = vmatprep.subr.mxu0 0.0
      %250 = vmatpush1.msra.mxu0 %v203
      %251 = vmatprep.subr.mxu0 0.0
      %252 = vmatpush2.msra.mxu0 0.0
      %253 = vmatprep.subr.mxu0 0.0
      %254 = vmatpush2.msra.mxu0 0.0
      %255 = vmatprep.subr.mxu0 0.0
      %256 = vmatpush2.msra.mxu0 0.0
      %257 = vmatprep.subr.mxu0 0.0
      %258 = vmatpush2.msra.mxu0 0.0
      %259 = vmatprep.subr.mxu0 0.0
      %260 = vmatpush2.msra.mxu0 0.0
      %261 = vmatprep.subr.mxu0 0.0
      %262 = vmatpush2.msra.mxu0 0.0
      %263 = vmatprep.subr.mxu0 0.0
      %264 = vmatpush2.msra.mxu0 0.0
      %265 = vmatprep.subr.mxu0 0.0
      %266 = vmatpush2.msra.mxu0 0.0
      %267 = vmatprep.subr.mxu0 0.0
      %268 = vmatpush2.msra.mxu0 0.0
      %269 = vmatprep.subr.mxu0 0.0
      %270 = vmatpush2.msra.mxu0 0.0
      %271 = vmatprep.subr.mxu0 0.0
      %272 = vmatpush2.msra.mxu0 0.0
      %273 = vmatprep.subr.mxu0 0.0
      %274 = vmatpush2.msra.mxu0 0.0
      %275 = vmatprep.subr.mxu0 0.0
      %276 = vmatpush2.msra.mxu0 0.0
      %277 = vmatprep.subr.mxu0 0.0
      %278 = vmatpush2.msra.mxu0 0.0
      %279 = vmatprep.subr.mxu0 0.0
      %280 = vmatpush2.msra.mxu0 0.0
      %281 = vmatprep.subr.mxu0 0.0
      %282 = vmatpush2.msra.mxu0 0.0
      %283 = vmatprep.mubr.f32.mxu0 0.0
      %284 = vmatmul.mubr.f32.gmra.mxu0 %v201
      %v285 = vpop.f32.mrf.mxu0
      %v286 = vadd.f32 0.0, %v285
      %v287 = vpop.f32.mrf.mxu0
      %288 = vmatprep.mubr.f32.mxu0 0.0
      %289 = vmatmul.mubr.f32.gmra.mxu0 %v202
      %v290 = vpop.f32.mrf.mxu0
      %v291 = vadd.f32 0.0, %v290
      %v292 = vpop.f32.mrf.mxu0
      %293 = vdwg.mxu0
      %v294 = vmul.f32 %v201, %v201
      %v295 = vmul.f32 %v202, %v202
      %296 = vmatprep.subr.mxu0 0.0
      %297 = vmatpush1.msra.mxu0 %v218
      %298 = vmatprep.subr.mxu0 0.0
      %299 = vmatpush1.msra.mxu0 %v217
      %300 = vmatprep.subr.mxu0 0.0
      %301 = vmatpush1.msra.mxu0 %v216
      %302 = vmatprep.subr.mxu0 0.0
      %303 = vmatpush1.msra.mxu0 %v215
      %304 = vmatprep.subr.mxu0 0.0
      %305 = vmatpush1.msra.mxu0 %v214
      %306 = vmatprep.subr.mxu0 0.0
      %307 = vmatpush1.msra.mxu0 %v213
      %308 = vmatprep.subr.mxu0 0.0
      %309 = vmatpush1.msra.mxu0 %v212
      %310 = vmatprep.subr.mxu0 0.0
      %311 = vmatpush1.msra.mxu0 %v211
      %312 = vmatprep.subr.mxu0 0.0
      %313 = vmatpush1.msra.mxu0 %v210
      %314 = vmatprep.subr.mxu0 0.0
      %315 = vmatpush1.msra.mxu0 %v209
      %316 = vmatprep.subr.mxu0 0.0
      %317 = vmatpush1.msra.mxu0 %v208
      %318 = vmatprep.subr.mxu0 0.0
      %319 = vmatpush1.msra.mxu0 %v207
      %320 = vmatprep.subr.mxu0 0.0
      %321 = vmatpush1.msra.mxu0 %v206
      %322 = vmatprep.subr.mxu0 0.0
      %323 = vmatpush1.msra.mxu0 %v205
      %324 = vmatprep.subr.mxu0 0.0
      %325 = vmatpush1.msra.mxu0 %v204
      %326 = vmatprep.subr.mxu0 0.0
      %327 = vmatpush1.msra.mxu0 %v203
      %328 = vmatprep.subr.mxu0 0.0
      %329 = vmatpush2.msra.mxu0 0.0
      %330 = vmatprep.subr.mxu0 0.0
      %331 = vmatpush2.msra.mxu0 0.0
      %332 = vmatprep.subr.mxu0 0.0
      %333 = vmatpush2.msra.mxu0 0.0
      %334 = vmatprep.subr.mxu0 0.0
      %335 = vmatpush2.msra.mxu0 0.0
      %336 = vmatprep.subr.mxu0 0.0
      %337 = vmatpush2.msra.mxu0 0.0
      %338 = vmatprep.subr.mxu0 0.0
      %339 = vmatpush2.msra.mxu0 0.0
      %340 = vmatprep.subr.mxu0 0.0
      %341 = vmatpush2.msra.mxu0 0.0
      %342 = vmatprep.subr.mxu0 0.0
      %343 = vmatpush2.msra.mxu0 0.0
      %344 = vmatprep.subr.mxu0 0.0
      %345 = vmatpush2.msra.mxu0 0.0
      %346 = vmatprep.subr.mxu0 0.0
      %347 = vmatpush2.msra.mxu0 0.0
      %348 = vmatprep.subr.mxu0 0.0
      %349 = vmatpush2.msra.mxu0 0.0
      %350 = vmatprep.subr.mxu0 0.0
      %351 = vmatpush2.msra.mxu0 0.0
      %352 = vmatprep.subr.mxu0 0.0
      %353 = vmatpush2.msra.mxu0 0.0
      %354 = vmatprep.subr.mxu0 0.0
      %355 = vmatpush2.msra.mxu0 0.0
      %356 = vmatprep.subr.mxu0 0.0
      %357 = vmatpush2.msra.mxu0 0.0
      %358 = vmatprep.subr.mxu0 0.0
      %359 = vmatpush2.msra.mxu0 0.0
      %360 = vmatprep.mubr.f32.mxu0 0.0
      %361 = vmatmul.mubr.f32.gmra.mxu0 %v294
      %v362 = vpop.f32.mrf.mxu0
      %v363 = vadd.f32 0.0, %v362
      %v364 = vpop.f32.mrf.mxu0
      %365 = vmatprep.mubr.f32.mxu0 0.0
      %366 = vmatmul.mubr.f32.gmra.mxu0 %v295
      %v367 = vpop.f32.mrf.mxu0
      %v368 = vadd.f32 0.0, %v367
      %v369 = vpop.f32.mrf.mxu0
      %370 = vdwg.mxu0
      %v371 = vmul.f32 %v286, %v286
      %v372 = vmul.f32 %v291, %v291
      %v373 = vsub.f32 %v363, %v371
      %v374 = vsub.f32 %v368, %v372
      %v375 = vmax.f32 %v373, 0.0
      %v376 = vmax.f32 %v374, 0.0
      %v377 = vsub.f32 %v201, %v286
      %v378 = vsub.f32 %v202, %v291
      %v379 = vadd.f32 %v375, 1e-05
      %v380 = vadd.f32 %v376, 1e-05
      %v381 = vrsqrt.pop %v379
      %v382 = vrsqrt.pop %v380
      %v383 = vmul.f32 %v377, %v381
      %v384 = vmul.f32 %v378, %v382
      %v385 = vld [vmem:[%s1] sm:$0x1]
      %v387 = vlaneseq
      %v388 = vshrl.u32 %v387, 7
      %v389 = vsub.s32 0, %v388
      %v390 = vrot.slane %v385, %v389
      %v392 = vmul.f32 %v383, %v390
      %v393 = vmul.f32 %v384, %v390
      %v394 = vld [vmem:[%s2] sm:$0x1]
      %v396 = vlaneseq
      %v397 = vshrl.u32 %v396, 7
      %v398 = vsub.s32 0, %v397
      %v399 = vrot.slane %v394, %v398
      %v401 = vadd.f32 %v392, %v399
      %v402 = vadd.f32 %v393, %v399
      %403 = vst [vmem:[%s199] sm:$0xff] %v401
      %404 = vst [vmem:[%s199 + $0x8] sm:$0xff] %v402
      %s405 = smul.u32 2, %s15
      %p406 = scmp.lt.s32.totalorder %s405, 3
      %s407 = scalar_select %p406, %s405, 3
      %s408 = smul.addr %s407, 8
      %s409 = scalar_lea.vmem %s4, %s408
      // Predicated region
      $region37: #{structure_module_forward.3} parent=35 // pred_check
        %p410 = pneg %p122
      $region38: #{structure_module_forward.3} parent=35 // pred_check_branch
        %412 = sbr.rel (%p410) target = $region40
      $region39: #{structure_module_forward.3} parent=35 // pred_region
        %s413 = smul.u32 2, %s15
      $region40: #{structure_module_forward.3} parent=35 // pred_fallthru
        _
    $region36: #{structure_module_forward.3} parent=5 // pred_fallthru
      _
    %p414 = scmp.le.s32.totalorder 2, %s10
    // Predicated region
    $region41: #{structure_module_forward.3} parent=5 // pred_check
      %p415 = pneg %p414
    $region42: #{structure_module_forward.3} parent=5 // pred_check_branch
      %417 = sbr.rel (%p415) target = $region44
    $region43: #{structure_module_forward.3} parent=5 // pred_region
      %s418 = ssub.s32 %s10, 2
      // Predicated region
      $region45: #{structure_module_forward.3} parent=43 // pred_check
        %p419 = pneg %p128
      $region46: #{structure_module_forward.3} parent=43 // pred_check_branch
        %421 = sbr.rel (%p419) target = $region48
      $region47: #{structure_module_forward.3} parent=43 // pred_region
        %s422 = smul.u32 2, %s16
        %p423 = scmp.lt.s32.totalorder %s422, 3
        %s424 = scalar_select %p423, %s422, 3
        %s425 = smul.addr %s424, 8
        %s426 = scalar_lea.vmem %s4, %s425
      $region48: #{structure_module_forward.3} parent=43 // pred_fallthru
        _
    $region44: #{structure_module_forward.3} parent=5 // pred_fallthru
      _
  $region6: #{structure_module_forward.3} parent=0 // loop_footer
    %s14 = sadd.s32 1, %s10
  $region7: #{structure_module_forward.3} parent=0 // loop_footer_branch
    %9 = sbr.rel target = $region3
  $region8: #{structure_module_forward.3} parent=0 // loop_exit
    _

</llo_original>
